<compile_context>
chip_gen: v5e
topology: v5e:2x2
jax: 0.10.0
libtpu: 0.0.40
codegen_flags: <defaults>
</compile_context>

<pallas_src>
import jax
import jax.numpy as jnp
from jax import lax
from jax.experimental import pallas as pl
from jax.experimental.pallas import tpu as pltpu

G = 16  # grid length of every lookup table axis in this setup


# ----------------------------- in-kernel helpers -----------------------------

def _gen_pixel_index(x_col, grid_row, lane_f):
    """grid_sample._generate_index followed by the align_corners=True,
    padding_mode='border' pixel-coordinate conversion.

    x_col: (M, 1) query values; grid_row: (1, G) strictly descending grid;
    lane_f: hoisted (1, G) float lane iota.  Returns (M, 1) pixel coords.
    For a strictly descending grid, torch's `argmin(|x-x0|)` followed by
    `arg[x0[arg] > x] += 1` equals `count(x0 > x)` — one lane reduction.
    """
    m = x_col.shape[0]
    g = grid_row.shape[1]
    step = (g - 1.0) / 2.0
    g_first = grid_row[:, 0:1]      # (1,1) max value (grid descending)
    g_last = grid_row[:, g - 1:g]   # (1,1) min value

    xc = jnp.clip(x_col, g_last, g_first)                       # clamp(x0[-1], x0[0])
    arg = jnp.sum((grid_row > xc).astype(jnp.float32),
                  axis=1, keepdims=True)                        # (M,1) adjusted argmin
    argm1 = arg - 1.0
    argm1_wrap = jnp.where(argm1 < 0.0, argm1 + g, argm1)       # torch negative indexing

    # fused extraction of x0[arg] and x0[arg-1]: one reduce over a 2M-row stack
    sel_a = (lane_f == arg).astype(jnp.float32)                 # (M,G)
    sel_b = (lane_f == argm1_wrap).astype(jnp.float32)          # (M,G)
    gv = jnp.sum(jnp.concatenate([sel_a * grid_row, sel_b * grid_row], axis=0),
                 axis=1, keepdims=True)                         # (2M,1)
    g_a = gv[:m]
    g_am1 = gv[m:]

    index = (g_am1 - xc) / (g_am1 - g_a) / step + argm1 / step - 1.0   # in [-1, 1]
    pix = (index + 1.0) * 0.5 * (g - 1.0)                       # align_corners=True
    return jnp.clip(pix, 0.0, g - 1.0)                          # padding_mode='border'


def _bilinear_sample(tbl_t, pix_r, pix_c, lane_f, sub_f):
    """Bilinear lookup ≡ F.grid_sample(align_corners=True, padding_mode='border').

    tbl_t: (G2, G1) TRANSPOSED table (sublanes = x2 axis, lanes = x1 axis).
    pix_r: (Mr, 1) coordinate along the x1 axis; pix_c: (1, 1) coordinate along
    the x2 axis (always a single value at every call site in this network).
    One sublane reduce + one lane reduce, no rank-3 intermediate, no transpose.
    """
    wc = jnp.maximum(0.0, 1.0 - jnp.abs(pix_c - sub_f))         # (G2, 1)
    wr = jnp.maximum(0.0, 1.0 - jnp.abs(pix_r - lane_f))        # (Mr, G1)
    col = jnp.sum(tbl_t * wc, axis=0, keepdims=True)            # (1, G1)
    return jnp.sum(wr * col, axis=1, keepdims=True)             # (Mr, 1)


def _regu_term(x_col, grid_row):
    """mean(relu(x - x0[0] - 1e-3) + relu(x0[-1] + 1e-3 - x)) / mean(x) / 2"""
    g_first = grid_row[:, 0:1]
    g_last = grid_row[:, -1:]
    pen = (jnp.maximum(x_col - g_first - 0.001, 0.0)
           + jnp.maximum(g_last + 0.001 - x_col, 0.0))
    return (jnp.mean(pen, axis=0, keepdims=True)
            / jnp.mean(x_col, axis=0, keepdims=True) / 2.0)


# --------------------------------- the kernel --------------------------------

def _rnn_kernel(x_ref, slab_ref, out_ref):
    # hoisted iotas (JAX does not CSE broadcast_in_dim — build each exactly once)
    lane_f = lax.broadcasted_iota(jnp.int32, (1, G), 1).astype(jnp.float32)   # (1,16)
    sub_f = lax.broadcasted_iota(jnp.int32, (G, 1), 0).astype(jnp.float32)    # (16,1)
    lane128 = lax.broadcasted_iota(jnp.int32, (1, 128), 1)                    # (1,128)

    x = x_ref[...]                           # (N, 2)
    flag_col = x[:, 0:1]                     # (N, 1)
    val_col = x[:, 1:2]                      # (N, 1)
    flag1 = flag_col == 1.0
    flag2 = flag_col == 2.0

    # ---- unpack the single parameter slab (all static slices, one DMA) ----
    tbl_sw1_t = slab_ref[0:16, :]            # transposed tables (G2, G1)
    tbl_sw2_t = slab_ref[16:32, :]
    tbl_soa1_t = slab_ref[32:48, :]
    tbl_soa2_t = slab_ref[48:64, :]
    grids = slab_ref[64:72, :]               # (8, 16): 8 descending grid rows
    w = slab_ref[72:84, :]                   # (12, 16): weights + alphas

    sw_row = jax.nn.sigmoid(w[0:1, :])       # lanes 0,1 = sigmoid(s_weight)
    tw_rows = jax.nn.sigmoid(w[1:4, :])      # (3,16), lanes 0,1 = sigmoid(t_weight)
    tw2_rows = jax.nn.sigmoid(w[4:6, :])     # (2,16), lanes 0,1 = sigmoid(t_weight2)
    alpha1 = w[6:9, 0:1]                     # (3, 1)  (already flipped, as in torch)
    alpha2 = w[9:12, 0:1]                    # (3, 1)

    def switch_branch(flag, sw_col, g1, g2, tbl_t, alpha):
        # y_b = where(flag, gs_swK(x[:,1], sw[K]), 0) * alpha ; then matmul with tw
        pix_r = _gen_pixel_index(val_col, g1, lane_f)                 # (N, 1)
        pix_c = _gen_pixel_index(sw_col, g2, lane_f)                  # (1, 1)
        sampled = _bilinear_sample(tbl_t, pix_r, pix_c, lane_f, sub_f)  # (N, 1)
        yb = jnp.where(flag, sampled, 0.0) * alpha                    # (N, 1)
        # fused: both t_weight columns in ONE sublane reduce (lanes >=2 are junk)
        c_row = jnp.sum(yb * tw_rows, axis=0, keepdims=True)          # (1, 16)
        return c_row[:, 0:1], c_row[:, 1:2]

    y1_c0, y1_c1 = switch_branch(flag1, sw_row[:, 0:1],
                                 grids[0:1, :], grids[1:2, :], tbl_sw1_t, alpha1)
    y2_c0, y2_c1 = switch_branch(flag2, sw_row[:, 1:2],
                                 grids[2:3, :], grids[3:4, :], tbl_sw2_t, alpha2)

    def soa_branch(x1, x2, g1, g2, tbl_t):
        pix_r = _gen_pixel_index(x1, g1, lane_f)
        pix_c = _gen_pixel_index(x2, g2, lane_f)
        val = _bilinear_sample(tbl_t, pix_r, pix_c, lane_f, sub_f)    # (1, 1)
        reg = _regu_term(x1, g1) + _regu_term(x2, g2)                 # (1, 1)
        return val, reg

    v1, r1 = soa_branch(y1_c0, y2_c0, grids[4:5, :], grids[5:6, :], tbl_soa1_t)
    v2, r2 = soa_branch(y1_c1, y2_c1, grids[6:7, :], grids[7:8, :], tbl_soa2_t)

    # y = stack([y_1, y_2], -1) @ sigmoid(t_weight2); lanes >= 2 of y_wide are junk
    y_wide = v1 * tw2_rows[0:1, :] + v2 * tw2_rows[1:2, :]            # (1, 16)
    regu = r1 + r2                                                    # (1, 1)

    # single lane-dense (1, 128) output row: [y0, y1, regu, 0, ...]
    out_ref[...] = (jnp.where(lane128 == 0, y_wide[:, 0:1], 0.0)
                    + jnp.where(lane128 == 1, y_wide[:, 1:2], 0.0)
                    + jnp.where(lane128 == 2, regu, 0.0))


# --------------------------------- wrapper ------------------------------------

def pack_params(s_weight, t_weight, t_weight2, sw1, sw2, soa1, soa2):
    """Pack every parameter into one (84, 16) f32 slab (single input DMA).

    sw1/sw2 = (x1, x2, tbl, alpha); soa1/soa2 = (x1, x2, tbl).
    Tables are stored TRANSPOSED (x2 on sublanes, x1 on lanes).
    Row map: 0:64 tables | 64:72 grids | 72 s_weight | 73:76 t_weight
             | 76:78 t_weight2 | 78:81 alpha1 (lane 0) | 81:84 alpha2 (lane 0).
    """
    def row16(v):
        v = jnp.asarray(v, jnp.float32).reshape(-1)
        return jnp.pad(v, (0, G - v.shape[0]))[None, :]

    def rows16(m):
        m = jnp.asarray(m, jnp.float32)
        return jnp.pad(m, ((0, 0), (0, G - m.shape[1])))

    def col16(v, r):
        v = jnp.asarray(v, jnp.float32).reshape(r, 1)
        return jnp.pad(v, ((0, 0), (0, G - 1)))

    tables = [jnp.asarray(t, jnp.float32).T
              for t in (sw1[2], sw2[2], soa1[2], soa2[2])]
    grid_rows = [row16(g) for g in (sw1[0], sw1[1], sw2[0], sw2[1],
                                    soa1[0], soa1[1], soa2[0], soa2[1])]
    weight_rows = [row16(s_weight), rows16(t_weight), rows16(t_weight2),
                   col16(sw1[3], 3), col16(sw2[3], 3)]
    slab = jnp.concatenate(tables + grid_rows + weight_rows, axis=0)
    assert slab.shape == (84, G)
    return slab


def rnn_forward(x, slab):
    """x: (3, 2); slab: (84, 16) from pack_params. Returns (y (1,2), regu scalar)."""
    # The reference hard-codes batch N == 3 (alpha has 3 entries, t_weight is (3,2)).
    assert x.shape == (3, 2), "RNN reference requires batch size 3"
    vmem = pl.BlockSpec(memory_space=pltpu.MemorySpace.VMEM)
    out = pl.pallas_call(
        _rnn_kernel,
        out_shape=jax.ShapeDtypeStruct((1, 128), jnp.float32),
        in_specs=[vmem, vmem],
        out_specs=vmem,
    )(x, slab)
    return out[:, 0:2], out[0, 2]


# ---------------------------- deterministic setup ------------------------------

def make_gs_data(key, g1_hi, g1_lo, g2_hi, g2_lo, n_alpha=None):
    """Synthesizes one grid_sample module's data (descending grids, table, alpha)."""
    k_tbl, k_alpha = jax.random.split(key, 2)
    x1 = jnp.linspace(g1_hi, g1_lo, G, dtype=jnp.float32)   # strictly descending
    x2 = jnp.linspace(g2_hi, g2_lo, G, dtype=jnp.float32)
    tbl = jax.random.uniform(k_tbl, (G, G), jnp.float32, 0.2, 0.9)
    if n_alpha is None:
        return (x1, x2, tbl)
    alpha_raw = jax.random.uniform(k_alpha, (n_alpha,), jnp.float32, 0.3, 1.0)
    alpha = jnp.flip(alpha_raw)   # torch: alpha = flip(raw[None, :], dim=1)
    return (x1, x2, tbl, alpha)


if __name__ == "__main__":
    key = jax.random.PRNGKey(0)
    ks = jax.random.split(key, 9)
    N = 3   # batch size (must equal 3: alpha broadcast + matmul with t_weight (3,2))

    # nn.Parameter(torch.randn(...)) equivalents (deterministic)
    s_weight = jax.random.normal(ks[0], (2,), jnp.float32)
    t_weight = jax.random.normal(ks[1], (3, 2), jnp.float32)
    t_weight2 = jax.random.normal(ks[2], (2, 2), jnp.float32)

    # synthetic grid_sample module data (replaces scio.loadmat)
    sw1 = make_gs_data(ks[3], 1.00, 0.10, 0.95, 0.05, n_alpha=N)
    sw2 = make_gs_data(ks[4], 0.98, 0.08, 0.97, 0.07, n_alpha=N)
    soa1 = make_gs_data(ks[5], 1.20, 0.05, 1.20, 0.05)
    soa2 = make_gs_data(ks[6], 1.10, 0.04, 1.10, 0.04)

    # input x: (N, 2); column 0 is the switch flag (1 or 2), column 1 the value
    vals = jax.random.uniform(ks[7], (N,), jnp.float32, 0.2, 0.9)
    flags = jnp.array([1.0, 2.0, 1.0], jnp.float32)
    x = jnp.stack([flags, vals], axis=1)

    slab = pack_params(s_weight, t_weight, t_weight2, sw1, sw2, soa1, soa2)

    y, regu = rnn_forward(x, slab)
    jax.block_until_ready((y, regu))
    assert y.shape == (1, 2) and regu.shape == ()
    print("KERNEL_OK")
</pallas_src>

<mosaic_0001>
module attributes {stable_mosaic.version = 11 : i64} {
  func.func @_rnn_kernel(%arg0: memref<3x2xf32, #tpu.memory_space<vmem>>, %arg1: memref<84x16xf32, #tpu.memory_space<vmem>>, %arg2: memref<1x128xf32, #tpu.memory_space<vmem>>) attributes {dimension_semantics = [], scalar_prefetch = 0 : i64, scratch_operands = 0 : i64, tpu.core_type = #tpu.core_type<tc>} {
    %0 = tpu.iota {dimensions = array<i32: 1>} : vector<1x16xi32>
    %1 = arith.sitofp %0 : vector<1x16xi32> to vector<1x16xf32>
    %2 = tpu.iota {dimensions = array<i32: 0>} : vector<16x1xi32>
    %3 = arith.sitofp %2 : vector<16x1xi32> to vector<16x1xf32>
    %4 = tpu.iota {dimensions = array<i32: 1>} : vector<1x128xi32>
    %c0 = arith.constant 0 : index
    %c0_0 = arith.constant 0 : index
    %5 = vector.load %arg0[%c0, %c0_0] : memref<3x2xf32, #tpu.memory_space<vmem>>, vector<3x2xf32>
    %6 = vector.extract_strided_slice %5 {offsets = [0, 0], sizes = [3, 1], strides = [1, 1]} : vector<3x2xf32> to vector<3x1xf32>
    %7 = vector.extract_strided_slice %5 {offsets = [0, 1], sizes = [3, 1], strides = [1, 1]} : vector<3x2xf32> to vector<3x1xf32>
    %cst = arith.constant 1.000000e+00 : f32
    %8 = vector.broadcast %cst : f32 to vector<3x1xf32>
    %9 = arith.cmpf oeq, %6, %8 : vector<3x1xf32>
    %cst_1 = arith.constant 2.000000e+00 : f32
    %10 = vector.broadcast %cst_1 : f32 to vector<3x1xf32>
    %11 = arith.cmpf oeq, %6, %10 : vector<3x1xf32>
    %c0_2 = arith.constant 0 : index
    %c0_3 = arith.constant 0 : index
    %12 = vector.load %arg1[%c0_2, %c0_3] : memref<84x16xf32, #tpu.memory_space<vmem>>, vector<16x16xf32>
    %c16 = arith.constant 16 : index
    %c0_4 = arith.constant 0 : index
    %13 = vector.load %arg1[%c16, %c0_4] : memref<84x16xf32, #tpu.memory_space<vmem>>, vector<16x16xf32>
    %c32 = arith.constant 32 : index
    %c0_5 = arith.constant 0 : index
    %14 = vector.load %arg1[%c32, %c0_5] : memref<84x16xf32, #tpu.memory_space<vmem>>, vector<16x16xf32>
    %c48 = arith.constant 48 : index
    %c0_6 = arith.constant 0 : index
    %15 = vector.load %arg1[%c48, %c0_6] : memref<84x16xf32, #tpu.memory_space<vmem>>, vector<16x16xf32>
    %c64 = arith.constant 64 : index
    %c0_7 = arith.constant 0 : index
    %16 = vector.load %arg1[%c64, %c0_7] : memref<84x16xf32, #tpu.memory_space<vmem>>, vector<8x16xf32>
    %c72 = arith.constant 72 : index
    %c0_8 = arith.constant 0 : index
    %17 = vector.load %arg1[%c72, %c0_8] : memref<84x16xf32, #tpu.memory_space<vmem>>, vector<12x16xf32>
    %18 = vector.extract_strided_slice %17 {offsets = [0, 0], sizes = [1, 16], strides = [1, 1]} : vector<12x16xf32> to vector<1x16xf32>
    %19 = arith.negf %18 : vector<1x16xf32>
    %20 = math.exp %19 : vector<1x16xf32>
    %cst_9 = arith.constant 1.000000e+00 : f32
    %21 = vector.broadcast %cst_9 : f32 to vector<1x16xf32>
    %22 = arith.addf %21, %20 : vector<1x16xf32>
    %23 = arith.divf %21, %22 : vector<1x16xf32>
    %24 = vector.extract_strided_slice %17 {offsets = [1, 0], sizes = [3, 16], strides = [1, 1]} : vector<12x16xf32> to vector<3x16xf32>
    %25 = arith.negf %24 : vector<3x16xf32>
    %26 = math.exp %25 : vector<3x16xf32>
    %cst_10 = arith.constant 1.000000e+00 : f32
    %27 = vector.broadcast %cst_10 : f32 to vector<3x16xf32>
    %28 = arith.addf %27, %26 : vector<3x16xf32>
    %29 = arith.divf %27, %28 : vector<3x16xf32>
    %30 = vector.extract_strided_slice %17 {offsets = [4, 0], sizes = [2, 16], strides = [1, 1]} : vector<12x16xf32> to vector<2x16xf32>
    %31 = arith.negf %30 : vector<2x16xf32>
    %32 = math.exp %31 : vector<2x16xf32>
    %cst_11 = arith.constant 1.000000e+00 : f32
    %33 = vector.broadcast %cst_11 : f32 to vector<2x16xf32>
    %34 = arith.addf %33, %32 : vector<2x16xf32>
    %35 = arith.divf %33, %34 : vector<2x16xf32>
    %36 = vector.extract_strided_slice %17 {offsets = [6, 0], sizes = [3, 1], strides = [1, 1]} : vector<12x16xf32> to vector<3x1xf32>
    %37 = vector.extract_strided_slice %17 {offsets = [9, 0], sizes = [3, 1], strides = [1, 1]} : vector<12x16xf32> to vector<3x1xf32>
    %38 = vector.extract_strided_slice %23 {offsets = [0, 0], sizes = [1, 1], strides = [1, 1]} : vector<1x16xf32> to vector<1x1xf32>
    %39 = vector.extract_strided_slice %16 {offsets = [0, 0], sizes = [1, 16], strides = [1, 1]} : vector<8x16xf32> to vector<1x16xf32>
    %40 = vector.extract_strided_slice %16 {offsets = [1, 0], sizes = [1, 16], strides = [1, 1]} : vector<8x16xf32> to vector<1x16xf32>
    %41 = vector.extract_strided_slice %39 {offsets = [0, 0], sizes = [1, 1], strides = [1, 1]} : vector<1x16xf32> to vector<1x1xf32>
    %42 = vector.extract_strided_slice %39 {offsets = [0, 15], sizes = [1, 1], strides = [1, 1]} : vector<1x16xf32> to vector<1x1xf32>
    %43 = vector.broadcast %42 : vector<1x1xf32> to vector<3x1xf32>
    %44 = arith.maximumf %43, %7 : vector<3x1xf32>
    %45 = vector.broadcast %41 : vector<1x1xf32> to vector<3x1xf32>
    %46 = arith.minimumf %45, %44 : vector<3x1xf32>
    %47 = vector.broadcast %39 : vector<1x16xf32> to vector<3x16xf32>
    %48 = vector.broadcast %46 : vector<3x1xf32> to vector<3x16xf32>
    %49 = arith.cmpf ogt, %47, %48 : vector<3x16xf32>
    %50 = arith.extui %49 : vector<3x16xi1> to vector<3x16xi32>
    %51 = arith.sitofp %50 : vector<3x16xi32> to vector<3x16xf32>
    %cst_12 = arith.constant dense<0.000000e+00> : vector<3xf32>
    %52 = vector.multi_reduction <add>, %51, %cst_12 [1] : vector<3x16xf32> to vector<3xf32>
    %53 = vector.shape_cast %52 : vector<3xf32> to vector<3x1xf32>
    %cst_13 = arith.constant 1.000000e+00 : f32
    %54 = vector.broadcast %cst_13 : f32 to vector<3x1xf32>
    %55 = arith.subf %53, %54 : vector<3x1xf32>
    %cst_14 = arith.constant 0.000000e+00 : f32
    %56 = vector.broadcast %cst_14 : f32 to vector<3x1xf32>
    %57 = arith.cmpf olt, %55, %56 : vector<3x1xf32>
    %cst_15 = arith.constant 1.600000e+01 : f32
    %58 = vector.broadcast %cst_15 : f32 to vector<3x1xf32>
    %59 = arith.addf %55, %58 : vector<3x1xf32>
    %60 = arith.select %57, %59, %55 : vector<3x1xi1>, vector<3x1xf32>
    %61 = vector.broadcast %1 : vector<1x16xf32> to vector<3x16xf32>
    %62 = vector.broadcast %53 : vector<3x1xf32> to vector<3x16xf32>
    %63 = arith.cmpf oeq, %61, %62 : vector<3x16xf32>
    %64 = arith.extui %63 : vector<3x16xi1> to vector<3x16xi32>
    %65 = arith.sitofp %64 : vector<3x16xi32> to vector<3x16xf32>
    %66 = vector.broadcast %1 : vector<1x16xf32> to vector<3x16xf32>
    %67 = vector.broadcast %60 : vector<3x1xf32> to vector<3x16xf32>
    %68 = arith.cmpf oeq, %66, %67 : vector<3x16xf32>
    %69 = arith.extui %68 : vector<3x16xi1> to vector<3x16xi32>
    %70 = arith.sitofp %69 : vector<3x16xi32> to vector<3x16xf32>
    %71 = vector.broadcast %39 : vector<1x16xf32> to vector<3x16xf32>
    %72 = arith.mulf %65, %71 : vector<3x16xf32>
    %73 = vector.broadcast %39 : vector<1x16xf32> to vector<3x16xf32>
    %74 = arith.mulf %70, %73 : vector<3x16xf32>
    %75 = tpu.concatenate %72, %74 in 0 : vector<3x16xf32>, vector<3x16xf32> -> vector<6x16xf32>
    %cst_16 = arith.constant dense<0.000000e+00> : vector<6xf32>
    %76 = vector.multi_reduction <add>, %75, %cst_16 [1] : vector<6x16xf32> to vector<6xf32>
    %77 = vector.shape_cast %76 : vector<6xf32> to vector<6x1xf32>
    %78 = vector.extract_strided_slice %77 {offsets = [0, 0], sizes = [3, 1], strides = [1, 1]} : vector<6x1xf32> to vector<3x1xf32>
    %79 = vector.extract_strided_slice %77 {offsets = [3, 0], sizes = [3, 1], strides = [1, 1]} : vector<6x1xf32> to vector<3x1xf32>
    %80 = arith.subf %79, %46 : vector<3x1xf32>
    %81 = arith.subf %79, %78 : vector<3x1xf32>
    %82 = arith.divf %80, %81 : vector<3x1xf32>
    %cst_17 = arith.constant 7.500000e+00 : f32
    %83 = vector.broadcast %cst_17 : f32 to vector<3x1xf32>
    %84 = arith.divf %82, %83 : vector<3x1xf32>
    %cst_18 = arith.constant 7.500000e+00 : f32
    %85 = vector.broadcast %cst_18 : f32 to vector<3x1xf32>
    %86 = arith.divf %55, %85 : vector<3x1xf32>
    %87 = arith.addf %84, %86 : vector<3x1xf32>
    %cst_19 = arith.constant 1.000000e+00 : f32
    %88 = vector.broadcast %cst_19 : f32 to vector<3x1xf32>
    %89 = arith.subf %87, %88 : vector<3x1xf32>
    %cst_20 = arith.constant 1.000000e+00 : f32
    %90 = vector.broadcast %cst_20 : f32 to vector<3x1xf32>
    %91 = arith.addf %89, %90 : vector<3x1xf32>
    %cst_21 = arith.constant 5.000000e-01 : f32
    %92 = vector.broadcast %cst_21 : f32 to vector<3x1xf32>
    %93 = arith.mulf %91, %92 : vector<3x1xf32>
    %cst_22 = arith.constant 1.500000e+01 : f32
    %94 = vector.broadcast %cst_22 : f32 to vector<3x1xf32>
    %95 = arith.mulf %93, %94 : vector<3x1xf32>
    %cst_23 = arith.constant 0.000000e+00 : f32
    %cst_24 = arith.constant 1.500000e+01 : f32
    %96 = vector.broadcast %cst_23 : f32 to vector<3x1xf32>
    %97 = arith.maximumf %96, %95 : vector<3x1xf32>
    %98 = vector.broadcast %cst_24 : f32 to vector<3x1xf32>
    %99 = arith.minimumf %98, %97 : vector<3x1xf32>
    %100 = vector.extract_strided_slice %40 {offsets = [0, 0], sizes = [1, 1], strides = [1, 1]} : vector<1x16xf32> to vector<1x1xf32>
    %101 = vector.extract_strided_slice %40 {offsets = [0, 15], sizes = [1, 1], strides = [1, 1]} : vector<1x16xf32> to vector<1x1xf32>
    %102 = arith.maximumf %101, %38 : vector<1x1xf32>
    %103 = arith.minimumf %100, %102 : vector<1x1xf32>
    %104 = vector.broadcast %103 : vector<1x1xf32> to vector<1x16xf32>
    %105 = arith.cmpf ogt, %40, %104 : vector<1x16xf32>
    %106 = arith.extui %105 : vector<1x16xi1> to vector<1x16xi32>
    %107 = arith.sitofp %106 : vector<1x16xi32> to vector<1x16xf32>
    %cst_25 = arith.constant dense<0.000000e+00> : vector<1xf32>
    %108 = vector.multi_reduction <add>, %107, %cst_25 [1] : vector<1x16xf32> to vector<1xf32>
    %109 = vector.shape_cast %108 : vector<1xf32> to vector<1x1xf32>
    %cst_26 = arith.constant 1.000000e+00 : f32
    %110 = vector.broadcast %cst_26 : f32 to vector<1x1xf32>
    %111 = arith.subf %109, %110 : vector<1x1xf32>
    %cst_27 = arith.constant 0.000000e+00 : f32
    %112 = vector.broadcast %cst_27 : f32 to vector<1x1xf32>
    %113 = arith.cmpf olt, %111, %112 : vector<1x1xf32>
    %cst_28 = arith.constant 1.600000e+01 : f32
    %114 = vector.broadcast %cst_28 : f32 to vector<1x1xf32>
    %115 = arith.addf %111, %114 : vector<1x1xf32>
    %116 = arith.select %113, %115, %111 : vector<1x1xi1>, vector<1x1xf32>
    %117 = vector.broadcast %109 : vector<1x1xf32> to vector<1x16xf32>
    %118 = arith.cmpf oeq, %1, %117 : vector<1x16xf32>
    %119 = arith.extui %118 : vector<1x16xi1> to vector<1x16xi32>
    %120 = arith.sitofp %119 : vector<1x16xi32> to vector<1x16xf32>
    %121 = vector.broadcast %116 : vector<1x1xf32> to vector<1x16xf32>
    %122 = arith.cmpf oeq, %1, %121 : vector<1x16xf32>
    %123 = arith.extui %122 : vector<1x16xi1> to vector<1x16xi32>
    %124 = arith.sitofp %123 : vector<1x16xi32> to vector<1x16xf32>
    %125 = arith.mulf %120, %40 : vector<1x16xf32>
    %126 = arith.mulf %124, %40 : vector<1x16xf32>
    %127 = tpu.concatenate %125, %126 in 0 : vector<1x16xf32>, vector<1x16xf32> -> vector<2x16xf32>
    %cst_29 = arith.constant dense<0.000000e+00> : vector<2xf32>
    %128 = vector.multi_reduction <add>, %127, %cst_29 [1] : vector<2x16xf32> to vector<2xf32>
    %129 = vector.shape_cast %128 : vector<2xf32> to vector<2x1xf32>
    %130 = vector.extract_strided_slice %129 {offsets = [0, 0], sizes = [1, 1], strides = [1, 1]} : vector<2x1xf32> to vector<1x1xf32>
    %131 = vector.extract_strided_slice %129 {offsets = [1, 0], sizes = [1, 1], strides = [1, 1]} : vector<2x1xf32> to vector<1x1xf32>
    %132 = arith.subf %131, %103 : vector<1x1xf32>
    %133 = arith.subf %131, %130 : vector<1x1xf32>
    %134 = arith.divf %132, %133 : vector<1x1xf32>
    %cst_30 = arith.constant 7.500000e+00 : f32
    %135 = vector.broadcast %cst_30 : f32 to vector<1x1xf32>
    %136 = arith.divf %134, %135 : vector<1x1xf32>
    %cst_31 = arith.constant 7.500000e+00 : f32
    %137 = vector.broadcast %cst_31 : f32 to vector<1x1xf32>
    %138 = arith.divf %111, %137 : vector<1x1xf32>
    %139 = arith.addf %136, %138 : vector<1x1xf32>
    %cst_32 = arith.constant 1.000000e+00 : f32
    %140 = vector.broadcast %cst_32 : f32 to vector<1x1xf32>
    %141 = arith.subf %139, %140 : vector<1x1xf32>
    %cst_33 = arith.constant 1.000000e+00 : f32
    %142 = vector.broadcast %cst_33 : f32 to vector<1x1xf32>
    %143 = arith.addf %141, %142 : vector<1x1xf32>
    %cst_34 = arith.constant 5.000000e-01 : f32
    %144 = vector.broadcast %cst_34 : f32 to vector<1x1xf32>
    %145 = arith.mulf %143, %144 : vector<1x1xf32>
    %cst_35 = arith.constant 1.500000e+01 : f32
    %146 = vector.broadcast %cst_35 : f32 to vector<1x1xf32>
    %147 = arith.mulf %145, %146 : vector<1x1xf32>
    %cst_36 = arith.constant 0.000000e+00 : f32
    %cst_37 = arith.constant 1.500000e+01 : f32
    %148 = vector.broadcast %cst_36 : f32 to vector<1x1xf32>
    %149 = arith.maximumf %148, %147 : vector<1x1xf32>
    %150 = vector.broadcast %cst_37 : f32 to vector<1x1xf32>
    %151 = arith.minimumf %150, %149 : vector<1x1xf32>
    %152 = vector.broadcast %151 : vector<1x1xf32> to vector<16x1xf32>
    %153 = arith.subf %152, %3 : vector<16x1xf32>
    %154 = math.absf %153 : vector<16x1xf32>
    %cst_38 = arith.constant 1.000000e+00 : f32
    %155 = vector.broadcast %cst_38 : f32 to vector<16x1xf32>
    %156 = arith.subf %155, %154 : vector<16x1xf32>
    %cst_39 = arith.constant 0.000000e+00 : f32
    %157 = vector.broadcast %cst_39 : f32 to vector<16x1xf32>
    %158 = arith.maximumf %157, %156 : vector<16x1xf32>
    %159 = vector.broadcast %99 : vector<3x1xf32> to vector<3x16xf32>
    %160 = vector.broadcast %1 : vector<1x16xf32> to vector<3x16xf32>
    %161 = arith.subf %159, %160 : vector<3x16xf32>
    %162 = math.absf %161 : vector<3x16xf32>
    %cst_40 = arith.constant 1.000000e+00 : f32
    %163 = vector.broadcast %cst_40 : f32 to vector<3x16xf32>
    %164 = arith.subf %163, %162 : vector<3x16xf32>
    %cst_41 = arith.constant 0.000000e+00 : f32
    %165 = vector.broadcast %cst_41 : f32 to vector<3x16xf32>
    %166 = arith.maximumf %165, %164 : vector<3x16xf32>
    %167 = vector.broadcast %158 : vector<16x1xf32> to vector<16x16xf32>
    %168 = arith.mulf %12, %167 : vector<16x16xf32>
    %cst_42 = arith.constant dense<0.000000e+00> : vector<16xf32>
    %169 = vector.multi_reduction <add>, %168, %cst_42 [0] : vector<16x16xf32> to vector<16xf32>
    %170 = vector.shape_cast %169 : vector<16xf32> to vector<1x16xf32>
    %171 = vector.broadcast %170 : vector<1x16xf32> to vector<3x16xf32>
    %172 = arith.mulf %166, %171 : vector<3x16xf32>
    %cst_43 = arith.constant dense<0.000000e+00> : vector<3xf32>
    %173 = vector.multi_reduction <add>, %172, %cst_43 [1] : vector<3x16xf32> to vector<3xf32>
    %174 = vector.shape_cast %173 : vector<3xf32> to vector<3x1xf32>
    %cst_44 = arith.constant 0.000000e+00 : f32
    %175 = vector.broadcast %cst_44 : f32 to vector<3x1xf32>
    %176 = arith.select %9, %174, %175 : vector<3x1xi1>, vector<3x1xf32>
    %177 = arith.mulf %176, %36 : vector<3x1xf32>
    %178 = vector.broadcast %177 : vector<3x1xf32> to vector<3x16xf32>
    %179 = arith.mulf %178, %29 : vector<3x16xf32>
    %cst_45 = arith.constant dense<0.000000e+00> : vector<16xf32>
    %180 = vector.multi_reduction <add>, %179, %cst_45 [0] : vector<3x16xf32> to vector<16xf32>
    %181 = vector.shape_cast %180 : vector<16xf32> to vector<1x16xf32>
    %182 = vector.extract_strided_slice %181 {offsets = [0, 0], sizes = [1, 1], strides = [1, 1]} : vector<1x16xf32> to vector<1x1xf32>
    %183 = vector.extract_strided_slice %181 {offsets = [0, 1], sizes = [1, 1], strides = [1, 1]} : vector<1x16xf32> to vector<1x1xf32>
    %184 = vector.extract_strided_slice %23 {offsets = [0, 1], sizes = [1, 1], strides = [1, 1]} : vector<1x16xf32> to vector<1x1xf32>
    %185 = vector.extract_strided_slice %16 {offsets = [2, 0], sizes = [1, 16], strides = [1, 1]} : vector<8x16xf32> to vector<1x16xf32>
    %186 = vector.extract_strided_slice %16 {offsets = [3, 0], sizes = [1, 16], strides = [1, 1]} : vector<8x16xf32> to vector<1x16xf32>
    %187 = vector.extract_strided_slice %185 {offsets = [0, 0], sizes = [1, 1], strides = [1, 1]} : vector<1x16xf32> to vector<1x1xf32>
    %188 = vector.extract_strided_slice %185 {offsets = [0, 15], sizes = [1, 1], strides = [1, 1]} : vector<1x16xf32> to vector<1x1xf32>
    %189 = vector.broadcast %188 : vector<1x1xf32> to vector<3x1xf32>
    %190 = arith.maximumf %189, %7 : vector<3x1xf32>
    %191 = vector.broadcast %187 : vector<1x1xf32> to vector<3x1xf32>
    %192 = arith.minimumf %191, %190 : vector<3x1xf32>
    %193 = vector.broadcast %185 : vector<1x16xf32> to vector<3x16xf32>
    %194 = vector.broadcast %192 : vector<3x1xf32> to vector<3x16xf32>
    %195 = arith.cmpf ogt, %193, %194 : vector<3x16xf32>
    %196 = arith.extui %195 : vector<3x16xi1> to vector<3x16xi32>
    %197 = arith.sitofp %196 : vector<3x16xi32> to vector<3x16xf32>
    %cst_46 = arith.constant dense<0.000000e+00> : vector<3xf32>
    %198 = vector.multi_reduction <add>, %197, %cst_46 [1] : vector<3x16xf32> to vector<3xf32>
    %199 = vector.shape_cast %198 : vector<3xf32> to vector<3x1xf32>
    %cst_47 = arith.constant 1.000000e+00 : f32
    %200 = vector.broadcast %cst_47 : f32 to vector<3x1xf32>
    %201 = arith.subf %199, %200 : vector<3x1xf32>
    %cst_48 = arith.constant 0.000000e+00 : f32
    %202 = vector.broadcast %cst_48 : f32 to vector<3x1xf32>
    %203 = arith.cmpf olt, %201, %202 : vector<3x1xf32>
    %cst_49 = arith.constant 1.600000e+01 : f32
    %204 = vector.broadcast %cst_49 : f32 to vector<3x1xf32>
    %205 = arith.addf %201, %204 : vector<3x1xf32>
    %206 = arith.select %203, %205, %201 : vector<3x1xi1>, vector<3x1xf32>
    %207 = vector.broadcast %1 : vector<1x16xf32> to vector<3x16xf32>
    %208 = vector.broadcast %199 : vector<3x1xf32> to vector<3x16xf32>
    %209 = arith.cmpf oeq, %207, %208 : vector<3x16xf32>
    %210 = arith.extui %209 : vector<3x16xi1> to vector<3x16xi32>
    %211 = arith.sitofp %210 : vector<3x16xi32> to vector<3x16xf32>
    %212 = vector.broadcast %1 : vector<1x16xf32> to vector<3x16xf32>
    %213 = vector.broadcast %206 : vector<3x1xf32> to vector<3x16xf32>
    %214 = arith.cmpf oeq, %212, %213 : vector<3x16xf32>
    %215 = arith.extui %214 : vector<3x16xi1> to vector<3x16xi32>
    %216 = arith.sitofp %215 : vector<3x16xi32> to vector<3x16xf32>
    %217 = vector.broadcast %185 : vector<1x16xf32> to vector<3x16xf32>
    %218 = arith.mulf %211, %217 : vector<3x16xf32>
    %219 = vector.broadcast %185 : vector<1x16xf32> to vector<3x16xf32>
    %220 = arith.mulf %216, %219 : vector<3x16xf32>
    %221 = tpu.concatenate %218, %220 in 0 : vector<3x16xf32>, vector<3x16xf32> -> vector<6x16xf32>
    %cst_50 = arith.constant dense<0.000000e+00> : vector<6xf32>
    %222 = vector.multi_reduction <add>, %221, %cst_50 [1] : vector<6x16xf32> to vector<6xf32>
    %223 = vector.shape_cast %222 : vector<6xf32> to vector<6x1xf32>
    %224 = vector.extract_strided_slice %223 {offsets = [0, 0], sizes = [3, 1], strides = [1, 1]} : vector<6x1xf32> to vector<3x1xf32>
    %225 = vector.extract_strided_slice %223 {offsets = [3, 0], sizes = [3, 1], strides = [1, 1]} : vector<6x1xf32> to vector<3x1xf32>
    %226 = arith.subf %225, %192 : vector<3x1xf32>
    %227 = arith.subf %225, %224 : vector<3x1xf32>
    %228 = arith.divf %226, %227 : vector<3x1xf32>
    %cst_51 = arith.constant 7.500000e+00 : f32
    %229 = vector.broadcast %cst_51 : f32 to vector<3x1xf32>
    %230 = arith.divf %228, %229 : vector<3x1xf32>
    %cst_52 = arith.constant 7.500000e+00 : f32
    %231 = vector.broadcast %cst_52 : f32 to vector<3x1xf32>
    %232 = arith.divf %201, %231 : vector<3x1xf32>
    %233 = arith.addf %230, %232 : vector<3x1xf32>
    %cst_53 = arith.constant 1.000000e+00 : f32
    %234 = vector.broadcast %cst_53 : f32 to vector<3x1xf32>
    %235 = arith.subf %233, %234 : vector<3x1xf32>
    %cst_54 = arith.constant 1.000000e+00 : f32
    %236 = vector.broadcast %cst_54 : f32 to vector<3x1xf32>
    %237 = arith.addf %235, %236 : vector<3x1xf32>
    %cst_55 = arith.constant 5.000000e-01 : f32
    %238 = vector.broadcast %cst_55 : f32 to vector<3x1xf32>
    %239 = arith.mulf %237, %238 : vector<3x1xf32>
    %cst_56 = arith.constant 1.500000e+01 : f32
    %240 = vector.broadcast %cst_56 : f32 to vector<3x1xf32>
    %241 = arith.mulf %239, %240 : vector<3x1xf32>
    %cst_57 = arith.constant 0.000000e+00 : f32
    %cst_58 = arith.constant 1.500000e+01 : f32
    %242 = vector.broadcast %cst_57 : f32 to vector<3x1xf32>
    %243 = arith.maximumf %242, %241 : vector<3x1xf32>
    %244 = vector.broadcast %cst_58 : f32 to vector<3x1xf32>
    %245 = arith.minimumf %244, %243 : vector<3x1xf32>
    %246 = vector.extract_strided_slice %186 {offsets = [0, 0], sizes = [1, 1], strides = [1, 1]} : vector<1x16xf32> to vector<1x1xf32>
    %247 = vector.extract_strided_slice %186 {offsets = [0, 15], sizes = [1, 1], strides = [1, 1]} : vector<1x16xf32> to vector<1x1xf32>
    %248 = arith.maximumf %247, %184 : vector<1x1xf32>
    %249 = arith.minimumf %246, %248 : vector<1x1xf32>
    %250 = vector.broadcast %249 : vector<1x1xf32> to vector<1x16xf32>
    %251 = arith.cmpf ogt, %186, %250 : vector<1x16xf32>
    %252 = arith.extui %251 : vector<1x16xi1> to vector<1x16xi32>
    %253 = arith.sitofp %252 : vector<1x16xi32> to vector<1x16xf32>
    %cst_59 = arith.constant dense<0.000000e+00> : vector<1xf32>
    %254 = vector.multi_reduction <add>, %253, %cst_59 [1] : vector<1x16xf32> to vector<1xf32>
    %255 = vector.shape_cast %254 : vector<1xf32> to vector<1x1xf32>
    %cst_60 = arith.constant 1.000000e+00 : f32
    %256 = vector.broadcast %cst_60 : f32 to vector<1x1xf32>
    %257 = arith.subf %255, %256 : vector<1x1xf32>
    %cst_61 = arith.constant 0.000000e+00 : f32
    %258 = vector.broadcast %cst_61 : f32 to vector<1x1xf32>
    %259 = arith.cmpf olt, %257, %258 : vector<1x1xf32>
    %cst_62 = arith.constant 1.600000e+01 : f32
    %260 = vector.broadcast %cst_62 : f32 to vector<1x1xf32>
    %261 = arith.addf %257, %260 : vector<1x1xf32>
    %262 = arith.select %259, %261, %257 : vector<1x1xi1>, vector<1x1xf32>
    %263 = vector.broadcast %255 : vector<1x1xf32> to vector<1x16xf32>
    %264 = arith.cmpf oeq, %1, %263 : vector<1x16xf32>
    %265 = arith.extui %264 : vector<1x16xi1> to vector<1x16xi32>
    %266 = arith.sitofp %265 : vector<1x16xi32> to vector<1x16xf32>
    %267 = vector.broadcast %262 : vector<1x1xf32> to vector<1x16xf32>
    %268 = arith.cmpf oeq, %1, %267 : vector<1x16xf32>
    %269 = arith.extui %268 : vector<1x16xi1> to vector<1x16xi32>
    %270 = arith.sitofp %269 : vector<1x16xi32> to vector<1x16xf32>
    %271 = arith.mulf %266, %186 : vector<1x16xf32>
    %272 = arith.mulf %270, %186 : vector<1x16xf32>
    %273 = tpu.concatenate %271, %272 in 0 : vector<1x16xf32>, vector<1x16xf32> -> vector<2x16xf32>
    %cst_63 = arith.constant dense<0.000000e+00> : vector<2xf32>
    %274 = vector.multi_reduction <add>, %273, %cst_63 [1] : vector<2x16xf32> to vector<2xf32>
    %275 = vector.shape_cast %274 : vector<2xf32> to vector<2x1xf32>
    %276 = vector.extract_strided_slice %275 {offsets = [0, 0], sizes = [1, 1], strides = [1, 1]} : vector<2x1xf32> to vector<1x1xf32>
    %277 = vector.extract_strided_slice %275 {offsets = [1, 0], sizes = [1, 1], strides = [1, 1]} : vector<2x1xf32> to vector<1x1xf32>
    %278 = arith.subf %277, %249 : vector<1x1xf32>
    %279 = arith.subf %277, %276 : vector<1x1xf32>
    %280 = arith.divf %278, %279 : vector<1x1xf32>
    %cst_64 = arith.constant 7.500000e+00 : f32
    %281 = vector.broadcast %cst_64 : f32 to vector<1x1xf32>
    %282 = arith.divf %280, %281 : vector<1x1xf32>
    %cst_65 = arith.constant 7.500000e+00 : f32
    %283 = vector.broadcast %cst_65 : f32 to vector<1x1xf32>
    %284 = arith.divf %257, %283 : vector<1x1xf32>
    %285 = arith.addf %282, %284 : vector<1x1xf32>
    %cst_66 = arith.constant 1.000000e+00 : f32
    %286 = vector.broadcast %cst_66 : f32 to vector<1x1xf32>
    %287 = arith.subf %285, %286 : vector<1x1xf32>
    %cst_67 = arith.constant 1.000000e+00 : f32
    %288 = vector.broadcast %cst_67 : f32 to vector<1x1xf32>
    %289 = arith.addf %287, %288 : vector<1x1xf32>
    %cst_68 = arith.constant 5.000000e-01 : f32
    %290 = vector.broadcast %cst_68 : f32 to vector<1x1xf32>
    %291 = arith.mulf %289, %290 : vector<1x1xf32>
    %cst_69 = arith.constant 1.500000e+01 : f32
    %292 = vector.broadcast %cst_69 : f32 to vector<1x1xf32>
    %293 = arith.mulf %291, %292 : vector<1x1xf32>
    %cst_70 = arith.constant 0.000000e+00 : f32
    %cst_71 = arith.constant 1.500000e+01 : f32
    %294 = vector.broadcast %cst_70 : f32 to vector<1x1xf32>
    %295 = arith.maximumf %294, %293 : vector<1x1xf32>
    %296 = vector.broadcast %cst_71 : f32 to vector<1x1xf32>
    %297 = arith.minimumf %296, %295 : vector<1x1xf32>
    %298 = vector.broadcast %297 : vector<1x1xf32> to vector<16x1xf32>
    %299 = arith.subf %298, %3 : vector<16x1xf32>
    %300 = math.absf %299 : vector<16x1xf32>
    %cst_72 = arith.constant 1.000000e+00 : f32
    %301 = vector.broadcast %cst_72 : f32 to vector<16x1xf32>
    %302 = arith.subf %301, %300 : vector<16x1xf32>
    %cst_73 = arith.constant 0.000000e+00 : f32
    %303 = vector.broadcast %cst_73 : f32 to vector<16x1xf32>
    %304 = arith.maximumf %303, %302 : vector<16x1xf32>
    %305 = vector.broadcast %245 : vector<3x1xf32> to vector<3x16xf32>
    %306 = vector.broadcast %1 : vector<1x16xf32> to vector<3x16xf32>
    %307 = arith.subf %305, %306 : vector<3x16xf32>
    %308 = math.absf %307 : vector<3x16xf32>
    %cst_74 = arith.constant 1.000000e+00 : f32
    %309 = vector.broadcast %cst_74 : f32 to vector<3x16xf32>
    %310 = arith.subf %309, %308 : vector<3x16xf32>
    %cst_75 = arith.constant 0.000000e+00 : f32
    %311 = vector.broadcast %cst_75 : f32 to vector<3x16xf32>
    %312 = arith.maximumf %311, %310 : vector<3x16xf32>
    %313 = vector.broadcast %304 : vector<16x1xf32> to vector<16x16xf32>
    %314 = arith.mulf %13, %313 : vector<16x16xf32>
    %cst_76 = arith.constant dense<0.000000e+00> : vector<16xf32>
    %315 = vector.multi_reduction <add>, %314, %cst_76 [0] : vector<16x16xf32> to vector<16xf32>
    %316 = vector.shape_cast %315 : vector<16xf32> to vector<1x16xf32>
    %317 = vector.broadcast %316 : vector<1x16xf32> to vector<3x16xf32>
    %318 = arith.mulf %312, %317 : vector<3x16xf32>
    %cst_77 = arith.constant dense<0.000000e+00> : vector<3xf32>
    %319 = vector.multi_reduction <add>, %318, %cst_77 [1] : vector<3x16xf32> to vector<3xf32>
    %320 = vector.shape_cast %319 : vector<3xf32> to vector<3x1xf32>
    %cst_78 = arith.constant 0.000000e+00 : f32
    %321 = vector.broadcast %cst_78 : f32 to vector<3x1xf32>
    %322 = arith.select %11, %320, %321 : vector<3x1xi1>, vector<3x1xf32>
    %323 = arith.mulf %322, %37 : vector<3x1xf32>
    %324 = vector.broadcast %323 : vector<3x1xf32> to vector<3x16xf32>
    %325 = arith.mulf %324, %29 : vector<3x16xf32>
    %cst_79 = arith.constant dense<0.000000e+00> : vector<16xf32>
    %326 = vector.multi_reduction <add>, %325, %cst_79 [0] : vector<3x16xf32> to vector<16xf32>
    %327 = vector.shape_cast %326 : vector<16xf32> to vector<1x16xf32>
    %328 = vector.extract_strided_slice %327 {offsets = [0, 0], sizes = [1, 1], strides = [1, 1]} : vector<1x16xf32> to vector<1x1xf32>
    %329 = vector.extract_strided_slice %327 {offsets = [0, 1], sizes = [1, 1], strides = [1, 1]} : vector<1x16xf32> to vector<1x1xf32>
    %330 = vector.extract_strided_slice %16 {offsets = [4, 0], sizes = [1, 16], strides = [1, 1]} : vector<8x16xf32> to vector<1x16xf32>
    %331 = vector.extract_strided_slice %16 {offsets = [5, 0], sizes = [1, 16], strides = [1, 1]} : vector<8x16xf32> to vector<1x16xf32>
    %332 = vector.extract_strided_slice %330 {offsets = [0, 0], sizes = [1, 1], strides = [1, 1]} : vector<1x16xf32> to vector<1x1xf32>
    %333 = vector.extract_strided_slice %330 {offsets = [0, 15], sizes = [1, 1], strides = [1, 1]} : vector<1x16xf32> to vector<1x1xf32>
    %334 = arith.maximumf %333, %182 : vector<1x1xf32>
    %335 = arith.minimumf %332, %334 : vector<1x1xf32>
    %336 = vector.broadcast %335 : vector<1x1xf32> to vector<1x16xf32>
    %337 = arith.cmpf ogt, %330, %336 : vector<1x16xf32>
    %338 = arith.extui %337 : vector<1x16xi1> to vector<1x16xi32>
    %339 = arith.sitofp %338 : vector<1x16xi32> to vector<1x16xf32>
    %cst_80 = arith.constant dense<0.000000e+00> : vector<1xf32>
    %340 = vector.multi_reduction <add>, %339, %cst_80 [1] : vector<1x16xf32> to vector<1xf32>
    %341 = vector.shape_cast %340 : vector<1xf32> to vector<1x1xf32>
    %cst_81 = arith.constant 1.000000e+00 : f32
    %342 = vector.broadcast %cst_81 : f32 to vector<1x1xf32>
    %343 = arith.subf %341, %342 : vector<1x1xf32>
    %cst_82 = arith.constant 0.000000e+00 : f32
    %344 = vector.broadcast %cst_82 : f32 to vector<1x1xf32>
    %345 = arith.cmpf olt, %343, %344 : vector<1x1xf32>
    %cst_83 = arith.constant 1.600000e+01 : f32
    %346 = vector.broadcast %cst_83 : f32 to vector<1x1xf32>
    %347 = arith.addf %343, %346 : vector<1x1xf32>
    %348 = arith.select %345, %347, %343 : vector<1x1xi1>, vector<1x1xf32>
    %349 = vector.broadcast %341 : vector<1x1xf32> to vector<1x16xf32>
    %350 = arith.cmpf oeq, %1, %349 : vector<1x16xf32>
    %351 = arith.extui %350 : vector<1x16xi1> to vector<1x16xi32>
    %352 = arith.sitofp %351 : vector<1x16xi32> to vector<1x16xf32>
    %353 = vector.broadcast %348 : vector<1x1xf32> to vector<1x16xf32>
    %354 = arith.cmpf oeq, %1, %353 : vector<1x16xf32>
    %355 = arith.extui %354 : vector<1x16xi1> to vector<1x16xi32>
    %356 = arith.sitofp %355 : vector<1x16xi32> to vector<1x16xf32>
    %357 = arith.mulf %352, %330 : vector<1x16xf32>
    %358 = arith.mulf %356, %330 : vector<1x16xf32>
    %359 = tpu.concatenate %357, %358 in 0 : vector<1x16xf32>, vector<1x16xf32> -> vector<2x16xf32>
    %cst_84 = arith.constant dense<0.000000e+00> : vector<2xf32>
    %360 = vector.multi_reduction <add>, %359, %cst_84 [1] : vector<2x16xf32> to vector<2xf32>
    %361 = vector.shape_cast %360 : vector<2xf32> to vector<2x1xf32>
    %362 = vector.extract_strided_slice %361 {offsets = [0, 0], sizes = [1, 1], strides = [1, 1]} : vector<2x1xf32> to vector<1x1xf32>
    %363 = vector.extract_strided_slice %361 {offsets = [1, 0], sizes = [1, 1], strides = [1, 1]} : vector<2x1xf32> to vector<1x1xf32>
    %364 = arith.subf %363, %335 : vector<1x1xf32>
    %365 = arith.subf %363, %362 : vector<1x1xf32>
    %366 = arith.divf %364, %365 : vector<1x1xf32>
    %cst_85 = arith.constant 7.500000e+00 : f32
    %367 = vector.broadcast %cst_85 : f32 to vector<1x1xf32>
    %368 = arith.divf %366, %367 : vector<1x1xf32>
    %cst_86 = arith.constant 7.500000e+00 : f32
    %369 = vector.broadcast %cst_86 : f32 to vector<1x1xf32>
    %370 = arith.divf %343, %369 : vector<1x1xf32>
    %371 = arith.addf %368, %370 : vector<1x1xf32>
    %cst_87 = arith.constant 1.000000e+00 : f32
    %372 = vector.broadcast %cst_87 : f32 to vector<1x1xf32>
    %373 = arith.subf %371, %372 : vector<1x1xf32>
    %cst_88 = arith.constant 1.000000e+00 : f32
    %374 = vector.broadcast %cst_88 : f32 to vector<1x1xf32>
    %375 = arith.addf %373, %374 : vector<1x1xf32>
    %cst_89 = arith.constant 5.000000e-01 : f32
    %376 = vector.broadcast %cst_89 : f32 to vector<1x1xf32>
    %377 = arith.mulf %375, %376 : vector<1x1xf32>
    %cst_90 = arith.constant 1.500000e+01 : f32
    %378 = vector.broadcast %cst_90 : f32 to vector<1x1xf32>
    %379 = arith.mulf %377, %378 : vector<1x1xf32>
    %cst_91 = arith.constant 0.000000e+00 : f32
    %cst_92 = arith.constant 1.500000e+01 : f32
    %380 = vector.broadcast %cst_91 : f32 to vector<1x1xf32>
    %381 = arith.maximumf %380, %379 : vector<1x1xf32>
    %382 = vector.broadcast %cst_92 : f32 to vector<1x1xf32>
    %383 = arith.minimumf %382, %381 : vector<1x1xf32>
    %384 = vector.extract_strided_slice %331 {offsets = [0, 0], sizes = [1, 1], strides = [1, 1]} : vector<1x16xf32> to vector<1x1xf32>
    %385 = vector.extract_strided_slice %331 {offsets = [0, 15], sizes = [1, 1], strides = [1, 1]} : vector<1x16xf32> to vector<1x1xf32>
    %386 = arith.maximumf %385, %328 : vector<1x1xf32>
    %387 = arith.minimumf %384, %386 : vector<1x1xf32>
    %388 = vector.broadcast %387 : vector<1x1xf32> to vector<1x16xf32>
    %389 = arith.cmpf ogt, %331, %388 : vector<1x16xf32>
    %390 = arith.extui %389 : vector<1x16xi1> to vector<1x16xi32>
    %391 = arith.sitofp %390 : vector<1x16xi32> to vector<1x16xf32>
    %cst_93 = arith.constant dense<0.000000e+00> : vector<1xf32>
    %392 = vector.multi_reduction <add>, %391, %cst_93 [1] : vector<1x16xf32> to vector<1xf32>
    %393 = vector.shape_cast %392 : vector<1xf32> to vector<1x1xf32>
    %cst_94 = arith.constant 1.000000e+00 : f32
    %394 = vector.broadcast %cst_94 : f32 to vector<1x1xf32>
    %395 = arith.subf %393, %394 : vector<1x1xf32>
    %cst_95 = arith.constant 0.000000e+00 : f32
    %396 = vector.broadcast %cst_95 : f32 to vector<1x1xf32>
    %397 = arith.cmpf olt, %395, %396 : vector<1x1xf32>
    %cst_96 = arith.constant 1.600000e+01 : f32
    %398 = vector.broadcast %cst_96 : f32 to vector<1x1xf32>
    %399 = arith.addf %395, %398 : vector<1x1xf32>
    %400 = arith.select %397, %399, %395 : vector<1x1xi1>, vector<1x1xf32>
    %401 = vector.broadcast %393 : vector<1x1xf32> to vector<1x16xf32>
    %402 = arith.cmpf oeq, %1, %401 : vector<1x16xf32>
    %403 = arith.extui %402 : vector<1x16xi1> to vector<1x16xi32>
    %404 = arith.sitofp %403 : vector<1x16xi32> to vector<1x16xf32>
    %405 = vector.broadcast %400 : vector<1x1xf32> to vector<1x16xf32>
    %406 = arith.cmpf oeq, %1, %405 : vector<1x16xf32>
    %407 = arith.extui %406 : vector<1x16xi1> to vector<1x16xi32>
    %408 = arith.sitofp %407 : vector<1x16xi32> to vector<1x16xf32>
    %409 = arith.mulf %404, %331 : vector<1x16xf32>
    %410 = arith.mulf %408, %331 : vector<1x16xf32>
    %411 = tpu.concatenate %409, %410 in 0 : vector<1x16xf32>, vector<1x16xf32> -> vector<2x16xf32>
    %cst_97 = arith.constant dense<0.000000e+00> : vector<2xf32>
    %412 = vector.multi_reduction <add>, %411, %cst_97 [1] : vector<2x16xf32> to vector<2xf32>
    %413 = vector.shape_cast %412 : vector<2xf32> to vector<2x1xf32>
    %414 = vector.extract_strided_slice %413 {offsets = [0, 0], sizes = [1, 1], strides = [1, 1]} : vector<2x1xf32> to vector<1x1xf32>
    %415 = vector.extract_strided_slice %413 {offsets = [1, 0], sizes = [1, 1], strides = [1, 1]} : vector<2x1xf32> to vector<1x1xf32>
    %416 = arith.subf %415, %387 : vector<1x1xf32>
    %417 = arith.subf %415, %414 : vector<1x1xf32>
    %418 = arith.divf %416, %417 : vector<1x1xf32>
    %cst_98 = arith.constant 7.500000e+00 : f32
    %419 = vector.broadcast %cst_98 : f32 to vector<1x1xf32>
    %420 = arith.divf %418, %419 : vector<1x1xf32>
    %cst_99 = arith.constant 7.500000e+00 : f32
    %421 = vector.broadcast %cst_99 : f32 to vector<1x1xf32>
    %422 = arith.divf %395, %421 : vector<1x1xf32>
    %423 = arith.addf %420, %422 : vector<1x1xf32>
    %cst_100 = arith.constant 1.000000e+00 : f32
    %424 = vector.broadcast %cst_100 : f32 to vector<1x1xf32>
    %425 = arith.subf %423, %424 : vector<1x1xf32>
    %cst_101 = arith.constant 1.000000e+00 : f32
    %426 = vector.broadcast %cst_101 : f32 to vector<1x1xf32>
    %427 = arith.addf %425, %426 : vector<1x1xf32>
    %cst_102 = arith.constant 5.000000e-01 : f32
    %428 = vector.broadcast %cst_102 : f32 to vector<1x1xf32>
    %429 = arith.mulf %427, %428 : vector<1x1xf32>
    %cst_103 = arith.constant 1.500000e+01 : f32
    %430 = vector.broadcast %cst_103 : f32 to vector<1x1xf32>
    %431 = arith.mulf %429, %430 : vector<1x1xf32>
    %cst_104 = arith.constant 0.000000e+00 : f32
    %cst_105 = arith.constant 1.500000e+01 : f32
    %432 = vector.broadcast %cst_104 : f32 to vector<1x1xf32>
    %433 = arith.maximumf %432, %431 : vector<1x1xf32>
    %434 = vector.broadcast %cst_105 : f32 to vector<1x1xf32>
    %435 = arith.minimumf %434, %433 : vector<1x1xf32>
    %436 = vector.broadcast %435 : vector<1x1xf32> to vector<16x1xf32>
    %437 = arith.subf %436, %3 : vector<16x1xf32>
    %438 = math.absf %437 : vector<16x1xf32>
    %cst_106 = arith.constant 1.000000e+00 : f32
    %439 = vector.broadcast %cst_106 : f32 to vector<16x1xf32>
    %440 = arith.subf %439, %438 : vector<16x1xf32>
    %cst_107 = arith.constant 0.000000e+00 : f32
    %441 = vector.broadcast %cst_107 : f32 to vector<16x1xf32>
    %442 = arith.maximumf %441, %440 : vector<16x1xf32>
    %443 = vector.broadcast %383 : vector<1x1xf32> to vector<1x16xf32>
    %444 = arith.subf %443, %1 : vector<1x16xf32>
    %445 = math.absf %444 : vector<1x16xf32>
    %cst_108 = arith.constant 1.000000e+00 : f32
    %446 = vector.broadcast %cst_108 : f32 to vector<1x16xf32>
    %447 = arith.subf %446, %445 : vector<1x16xf32>
    %cst_109 = arith.constant 0.000000e+00 : f32
    %448 = vector.broadcast %cst_109 : f32 to vector<1x16xf32>
    %449 = arith.maximumf %448, %447 : vector<1x16xf32>
    %450 = vector.broadcast %442 : vector<16x1xf32> to vector<16x16xf32>
    %451 = arith.mulf %14, %450 : vector<16x16xf32>
    %cst_110 = arith.constant dense<0.000000e+00> : vector<16xf32>
    %452 = vector.multi_reduction <add>, %451, %cst_110 [0] : vector<16x16xf32> to vector<16xf32>
    %453 = vector.shape_cast %452 : vector<16xf32> to vector<1x16xf32>
    %454 = arith.mulf %449, %453 : vector<1x16xf32>
    %cst_111 = arith.constant dense<0.000000e+00> : vector<1xf32>
    %455 = vector.multi_reduction <add>, %454, %cst_111 [1] : vector<1x16xf32> to vector<1xf32>
    %456 = vector.shape_cast %455 : vector<1xf32> to vector<1x1xf32>
    %457 = vector.extract_strided_slice %330 {offsets = [0, 0], sizes = [1, 1], strides = [1, 1]} : vector<1x16xf32> to vector<1x1xf32>
    %458 = vector.extract_strided_slice %330 {offsets = [0, 15], sizes = [1, 1], strides = [1, 1]} : vector<1x16xf32> to vector<1x1xf32>
    %459 = arith.subf %182, %457 : vector<1x1xf32>
    %cst_112 = arith.constant 1.000000e-03 : f32
    %460 = vector.broadcast %cst_112 : f32 to vector<1x1xf32>
    %461 = arith.subf %459, %460 : vector<1x1xf32>
    %cst_113 = arith.constant 0.000000e+00 : f32
    %462 = vector.broadcast %cst_113 : f32 to vector<1x1xf32>
    %463 = arith.maximumf %461, %462 : vector<1x1xf32>
    %cst_114 = arith.constant 1.000000e-03 : f32
    %464 = vector.broadcast %cst_114 : f32 to vector<1x1xf32>
    %465 = arith.addf %458, %464 : vector<1x1xf32>
    %466 = arith.subf %465, %182 : vector<1x1xf32>
    %cst_115 = arith.constant 0.000000e+00 : f32
    %467 = vector.broadcast %cst_115 : f32 to vector<1x1xf32>
    %468 = arith.maximumf %466, %467 : vector<1x1xf32>
    %469 = arith.addf %463, %468 : vector<1x1xf32>
    %cst_116 = arith.constant dense<0.000000e+00> : vector<1xf32>
    %470 = vector.multi_reduction <add>, %469, %cst_116 [0] : vector<1x1xf32> to vector<1xf32>
    %471 = vector.shape_cast %470 : vector<1xf32> to vector<1x1xf32>
    %cst_117 = arith.constant 1.000000e+00 : f32
    %472 = vector.broadcast %cst_117 : f32 to vector<1x1xf32>
    %473 = arith.divf %471, %472 : vector<1x1xf32>
    %cst_118 = arith.constant dense<0.000000e+00> : vector<1xf32>
    %474 = vector.multi_reduction <add>, %182, %cst_118 [0] : vector<1x1xf32> to vector<1xf32>
    %475 = vector.shape_cast %474 : vector<1xf32> to vector<1x1xf32>
    %cst_119 = arith.constant 1.000000e+00 : f32
    %476 = vector.broadcast %cst_119 : f32 to vector<1x1xf32>
    %477 = arith.divf %475, %476 : vector<1x1xf32>
    %478 = arith.divf %473, %477 : vector<1x1xf32>
    %cst_120 = arith.constant 2.000000e+00 : f32
    %479 = vector.broadcast %cst_120 : f32 to vector<1x1xf32>
    %480 = arith.divf %478, %479 : vector<1x1xf32>
    %481 = vector.extract_strided_slice %331 {offsets = [0, 0], sizes = [1, 1], strides = [1, 1]} : vector<1x16xf32> to vector<1x1xf32>
    %482 = vector.extract_strided_slice %331 {offsets = [0, 15], sizes = [1, 1], strides = [1, 1]} : vector<1x16xf32> to vector<1x1xf32>
    %483 = arith.subf %328, %481 : vector<1x1xf32>
    %cst_121 = arith.constant 1.000000e-03 : f32
    %484 = vector.broadcast %cst_121 : f32 to vector<1x1xf32>
    %485 = arith.subf %483, %484 : vector<1x1xf32>
    %cst_122 = arith.constant 0.000000e+00 : f32
    %486 = vector.broadcast %cst_122 : f32 to vector<1x1xf32>
    %487 = arith.maximumf %485, %486 : vector<1x1xf32>
    %cst_123 = arith.constant 1.000000e-03 : f32
    %488 = vector.broadcast %cst_123 : f32 to vector<1x1xf32>
    %489 = arith.addf %482, %488 : vector<1x1xf32>
    %490 = arith.subf %489, %328 : vector<1x1xf32>
    %cst_124 = arith.constant 0.000000e+00 : f32
    %491 = vector.broadcast %cst_124 : f32 to vector<1x1xf32>
    %492 = arith.maximumf %490, %491 : vector<1x1xf32>
    %493 = arith.addf %487, %492 : vector<1x1xf32>
    %cst_125 = arith.constant dense<0.000000e+00> : vector<1xf32>
    %494 = vector.multi_reduction <add>, %493, %cst_125 [0] : vector<1x1xf32> to vector<1xf32>
    %495 = vector.shape_cast %494 : vector<1xf32> to vector<1x1xf32>
    %cst_126 = arith.constant 1.000000e+00 : f32
    %496 = vector.broadcast %cst_126 : f32 to vector<1x1xf32>
    %497 = arith.divf %495, %496 : vector<1x1xf32>
    %cst_127 = arith.constant dense<0.000000e+00> : vector<1xf32>
    %498 = vector.multi_reduction <add>, %328, %cst_127 [0] : vector<1x1xf32> to vector<1xf32>
    %499 = vector.shape_cast %498 : vector<1xf32> to vector<1x1xf32>
    %cst_128 = arith.constant 1.000000e+00 : f32
    %500 = vector.broadcast %cst_128 : f32 to vector<1x1xf32>
    %501 = arith.divf %499, %500 : vector<1x1xf32>
    %502 = arith.divf %497, %501 : vector<1x1xf32>
    %cst_129 = arith.constant 2.000000e+00 : f32
    %503 = vector.broadcast %cst_129 : f32 to vector<1x1xf32>
    %504 = arith.divf %502, %503 : vector<1x1xf32>
    %505 = arith.addf %480, %504 : vector<1x1xf32>
    %506 = vector.extract_strided_slice %16 {offsets = [6, 0], sizes = [1, 16], strides = [1, 1]} : vector<8x16xf32> to vector<1x16xf32>
    %507 = vector.extract_strided_slice %16 {offsets = [7, 0], sizes = [1, 16], strides = [1, 1]} : vector<8x16xf32> to vector<1x16xf32>
    %508 = vector.extract_strided_slice %506 {offsets = [0, 0], sizes = [1, 1], strides = [1, 1]} : vector<1x16xf32> to vector<1x1xf32>
    %509 = vector.extract_strided_slice %506 {offsets = [0, 15], sizes = [1, 1], strides = [1, 1]} : vector<1x16xf32> to vector<1x1xf32>
    %510 = arith.maximumf %509, %183 : vector<1x1xf32>
    %511 = arith.minimumf %508, %510 : vector<1x1xf32>
    %512 = vector.broadcast %511 : vector<1x1xf32> to vector<1x16xf32>
    %513 = arith.cmpf ogt, %506, %512 : vector<1x16xf32>
    %514 = arith.extui %513 : vector<1x16xi1> to vector<1x16xi32>
    %515 = arith.sitofp %514 : vector<1x16xi32> to vector<1x16xf32>
    %cst_130 = arith.constant dense<0.000000e+00> : vector<1xf32>
    %516 = vector.multi_reduction <add>, %515, %cst_130 [1] : vector<1x16xf32> to vector<1xf32>
    %517 = vector.shape_cast %516 : vector<1xf32> to vector<1x1xf32>
    %cst_131 = arith.constant 1.000000e+00 : f32
    %518 = vector.broadcast %cst_131 : f32 to vector<1x1xf32>
    %519 = arith.subf %517, %518 : vector<1x1xf32>
    %cst_132 = arith.constant 0.000000e+00 : f32
    %520 = vector.broadcast %cst_132 : f32 to vector<1x1xf32>
    %521 = arith.cmpf olt, %519, %520 : vector<1x1xf32>
    %cst_133 = arith.constant 1.600000e+01 : f32
    %522 = vector.broadcast %cst_133 : f32 to vector<1x1xf32>
    %523 = arith.addf %519, %522 : vector<1x1xf32>
    %524 = arith.select %521, %523, %519 : vector<1x1xi1>, vector<1x1xf32>
    %525 = vector.broadcast %517 : vector<1x1xf32> to vector<1x16xf32>
    %526 = arith.cmpf oeq, %1, %525 : vector<1x16xf32>
    %527 = arith.extui %526 : vector<1x16xi1> to vector<1x16xi32>
    %528 = arith.sitofp %527 : vector<1x16xi32> to vector<1x16xf32>
    %529 = vector.broadcast %524 : vector<1x1xf32> to vector<1x16xf32>
    %530 = arith.cmpf oeq, %1, %529 : vector<1x16xf32>
    %531 = arith.extui %530 : vector<1x16xi1> to vector<1x16xi32>
    %532 = arith.sitofp %531 : vector<1x16xi32> to vector<1x16xf32>
    %533 = arith.mulf %528, %506 : vector<1x16xf32>
    %534 = arith.mulf %532, %506 : vector<1x16xf32>
    %535 = tpu.concatenate %533, %534 in 0 : vector<1x16xf32>, vector<1x16xf32> -> vector<2x16xf32>
    %cst_134 = arith.constant dense<0.000000e+00> : vector<2xf32>
    %536 = vector.multi_reduction <add>, %535, %cst_134 [1] : vector<2x16xf32> to vector<2xf32>
    %537 = vector.shape_cast %536 : vector<2xf32> to vector<2x1xf32>
    %538 = vector.extract_strided_slice %537 {offsets = [0, 0], sizes = [1, 1], strides = [1, 1]} : vector<2x1xf32> to vector<1x1xf32>
    %539 = vector.extract_strided_slice %537 {offsets = [1, 0], sizes = [1, 1], strides = [1, 1]} : vector<2x1xf32> to vector<1x1xf32>
    %540 = arith.subf %539, %511 : vector<1x1xf32>
    %541 = arith.subf %539, %538 : vector<1x1xf32>
    %542 = arith.divf %540, %541 : vector<1x1xf32>
    %cst_135 = arith.constant 7.500000e+00 : f32
    %543 = vector.broadcast %cst_135 : f32 to vector<1x1xf32>
    %544 = arith.divf %542, %543 : vector<1x1xf32>
    %cst_136 = arith.constant 7.500000e+00 : f32
    %545 = vector.broadcast %cst_136 : f32 to vector<1x1xf32>
    %546 = arith.divf %519, %545 : vector<1x1xf32>
    %547 = arith.addf %544, %546 : vector<1x1xf32>
    %cst_137 = arith.constant 1.000000e+00 : f32
    %548 = vector.broadcast %cst_137 : f32 to vector<1x1xf32>
    %549 = arith.subf %547, %548 : vector<1x1xf32>
    %cst_138 = arith.constant 1.000000e+00 : f32
    %550 = vector.broadcast %cst_138 : f32 to vector<1x1xf32>
    %551 = arith.addf %549, %550 : vector<1x1xf32>
    %cst_139 = arith.constant 5.000000e-01 : f32
    %552 = vector.broadcast %cst_139 : f32 to vector<1x1xf32>
    %553 = arith.mulf %551, %552 : vector<1x1xf32>
    %cst_140 = arith.constant 1.500000e+01 : f32
    %554 = vector.broadcast %cst_140 : f32 to vector<1x1xf32>
    %555 = arith.mulf %553, %554 : vector<1x1xf32>
    %cst_141 = arith.constant 0.000000e+00 : f32
    %cst_142 = arith.constant 1.500000e+01 : f32
    %556 = vector.broadcast %cst_141 : f32 to vector<1x1xf32>
    %557 = arith.maximumf %556, %555 : vector<1x1xf32>
    %558 = vector.broadcast %cst_142 : f32 to vector<1x1xf32>
    %559 = arith.minimumf %558, %557 : vector<1x1xf32>
    %560 = vector.extract_strided_slice %507 {offsets = [0, 0], sizes = [1, 1], strides = [1, 1]} : vector<1x16xf32> to vector<1x1xf32>
    %561 = vector.extract_strided_slice %507 {offsets = [0, 15], sizes = [1, 1], strides = [1, 1]} : vector<1x16xf32> to vector<1x1xf32>
    %562 = arith.maximumf %561, %329 : vector<1x1xf32>
    %563 = arith.minimumf %560, %562 : vector<1x1xf32>
    %564 = vector.broadcast %563 : vector<1x1xf32> to vector<1x16xf32>
    %565 = arith.cmpf ogt, %507, %564 : vector<1x16xf32>
    %566 = arith.extui %565 : vector<1x16xi1> to vector<1x16xi32>
    %567 = arith.sitofp %566 : vector<1x16xi32> to vector<1x16xf32>
    %cst_143 = arith.constant dense<0.000000e+00> : vector<1xf32>
    %568 = vector.multi_reduction <add>, %567, %cst_143 [1] : vector<1x16xf32> to vector<1xf32>
    %569 = vector.shape_cast %568 : vector<1xf32> to vector<1x1xf32>
    %cst_144 = arith.constant 1.000000e+00 : f32
    %570 = vector.broadcast %cst_144 : f32 to vector<1x1xf32>
    %571 = arith.subf %569, %570 : vector<1x1xf32>
    %cst_145 = arith.constant 0.000000e+00 : f32
    %572 = vector.broadcast %cst_145 : f32 to vector<1x1xf32>
    %573 = arith.cmpf olt, %571, %572 : vector<1x1xf32>
    %cst_146 = arith.constant 1.600000e+01 : f32
    %574 = vector.broadcast %cst_146 : f32 to vector<1x1xf32>
    %575 = arith.addf %571, %574 : vector<1x1xf32>
    %576 = arith.select %573, %575, %571 : vector<1x1xi1>, vector<1x1xf32>
    %577 = vector.broadcast %569 : vector<1x1xf32> to vector<1x16xf32>
    %578 = arith.cmpf oeq, %1, %577 : vector<1x16xf32>
    %579 = arith.extui %578 : vector<1x16xi1> to vector<1x16xi32>
    %580 = arith.sitofp %579 : vector<1x16xi32> to vector<1x16xf32>
    %581 = vector.broadcast %576 : vector<1x1xf32> to vector<1x16xf32>
    %582 = arith.cmpf oeq, %1, %581 : vector<1x16xf32>
    %583 = arith.extui %582 : vector<1x16xi1> to vector<1x16xi32>
    %584 = arith.sitofp %583 : vector<1x16xi32> to vector<1x16xf32>
    %585 = arith.mulf %580, %507 : vector<1x16xf32>
    %586 = arith.mulf %584, %507 : vector<1x16xf32>
    %587 = tpu.concatenate %585, %586 in 0 : vector<1x16xf32>, vector<1x16xf32> -> vector<2x16xf32>
    %cst_147 = arith.constant dense<0.000000e+00> : vector<2xf32>
    %588 = vector.multi_reduction <add>, %587, %cst_147 [1] : vector<2x16xf32> to vector<2xf32>
    %589 = vector.shape_cast %588 : vector<2xf32> to vector<2x1xf32>
    %590 = vector.extract_strided_slice %589 {offsets = [0, 0], sizes = [1, 1], strides = [1, 1]} : vector<2x1xf32> to vector<1x1xf32>
    %591 = vector.extract_strided_slice %589 {offsets = [1, 0], sizes = [1, 1], strides = [1, 1]} : vector<2x1xf32> to vector<1x1xf32>
    %592 = arith.subf %591, %563 : vector<1x1xf32>
    %593 = arith.subf %591, %590 : vector<1x1xf32>
    %594 = arith.divf %592, %593 : vector<1x1xf32>
    %cst_148 = arith.constant 7.500000e+00 : f32
    %595 = vector.broadcast %cst_148 : f32 to vector<1x1xf32>
    %596 = arith.divf %594, %595 : vector<1x1xf32>
    %cst_149 = arith.constant 7.500000e+00 : f32
    %597 = vector.broadcast %cst_149 : f32 to vector<1x1xf32>
    %598 = arith.divf %571, %597 : vector<1x1xf32>
    %599 = arith.addf %596, %598 : vector<1x1xf32>
    %cst_150 = arith.constant 1.000000e+00 : f32
    %600 = vector.broadcast %cst_150 : f32 to vector<1x1xf32>
    %601 = arith.subf %599, %600 : vector<1x1xf32>
    %cst_151 = arith.constant 1.000000e+00 : f32
    %602 = vector.broadcast %cst_151 : f32 to vector<1x1xf32>
    %603 = arith.addf %601, %602 : vector<1x1xf32>
    %cst_152 = arith.constant 5.000000e-01 : f32
    %604 = vector.broadcast %cst_152 : f32 to vector<1x1xf32>
    %605 = arith.mulf %603, %604 : vector<1x1xf32>
    %cst_153 = arith.constant 1.500000e+01 : f32
    %606 = vector.broadcast %cst_153 : f32 to vector<1x1xf32>
    %607 = arith.mulf %605, %606 : vector<1x1xf32>
    %cst_154 = arith.constant 0.000000e+00 : f32
    %cst_155 = arith.constant 1.500000e+01 : f32
    %608 = vector.broadcast %cst_154 : f32 to vector<1x1xf32>
    %609 = arith.maximumf %608, %607 : vector<1x1xf32>
    %610 = vector.broadcast %cst_155 : f32 to vector<1x1xf32>
    %611 = arith.minimumf %610, %609 : vector<1x1xf32>
    %612 = vector.broadcast %611 : vector<1x1xf32> to vector<16x1xf32>
    %613 = arith.subf %612, %3 : vector<16x1xf32>
    %614 = math.absf %613 : vector<16x1xf32>
    %cst_156 = arith.constant 1.000000e+00 : f32
    %615 = vector.broadcast %cst_156 : f32 to vector<16x1xf32>
    %616 = arith.subf %615, %614 : vector<16x1xf32>
    %cst_157 = arith.constant 0.000000e+00 : f32
    %617 = vector.broadcast %cst_157 : f32 to vector<16x1xf32>
    %618 = arith.maximumf %617, %616 : vector<16x1xf32>
    %619 = vector.broadcast %559 : vector<1x1xf32> to vector<1x16xf32>
    %620 = arith.subf %619, %1 : vector<1x16xf32>
    %621 = math.absf %620 : vector<1x16xf32>
    %cst_158 = arith.constant 1.000000e+00 : f32
    %622 = vector.broadcast %cst_158 : f32 to vector<1x16xf32>
    %623 = arith.subf %622, %621 : vector<1x16xf32>
    %cst_159 = arith.constant 0.000000e+00 : f32
    %624 = vector.broadcast %cst_159 : f32 to vector<1x16xf32>
    %625 = arith.maximumf %624, %623 : vector<1x16xf32>
    %626 = vector.broadcast %618 : vector<16x1xf32> to vector<16x16xf32>
    %627 = arith.mulf %15, %626 : vector<16x16xf32>
    %cst_160 = arith.constant dense<0.000000e+00> : vector<16xf32>
    %628 = vector.multi_reduction <add>, %627, %cst_160 [0] : vector<16x16xf32> to vector<16xf32>
    %629 = vector.shape_cast %628 : vector<16xf32> to vector<1x16xf32>
    %630 = arith.mulf %625, %629 : vector<1x16xf32>
    %cst_161 = arith.constant dense<0.000000e+00> : vector<1xf32>
    %631 = vector.multi_reduction <add>, %630, %cst_161 [1] : vector<1x16xf32> to vector<1xf32>
    %632 = vector.shape_cast %631 : vector<1xf32> to vector<1x1xf32>
    %633 = vector.extract_strided_slice %506 {offsets = [0, 0], sizes = [1, 1], strides = [1, 1]} : vector<1x16xf32> to vector<1x1xf32>
    %634 = vector.extract_strided_slice %506 {offsets = [0, 15], sizes = [1, 1], strides = [1, 1]} : vector<1x16xf32> to vector<1x1xf32>
    %635 = arith.subf %183, %633 : vector<1x1xf32>
    %cst_162 = arith.constant 1.000000e-03 : f32
    %636 = vector.broadcast %cst_162 : f32 to vector<1x1xf32>
    %637 = arith.subf %635, %636 : vector<1x1xf32>
    %cst_163 = arith.constant 0.000000e+00 : f32
    %638 = vector.broadcast %cst_163 : f32 to vector<1x1xf32>
    %639 = arith.maximumf %637, %638 : vector<1x1xf32>
    %cst_164 = arith.constant 1.000000e-03 : f32
    %640 = vector.broadcast %cst_164 : f32 to vector<1x1xf32>
    %641 = arith.addf %634, %640 : vector<1x1xf32>
    %642 = arith.subf %641, %183 : vector<1x1xf32>
    %cst_165 = arith.constant 0.000000e+00 : f32
    %643 = vector.broadcast %cst_165 : f32 to vector<1x1xf32>
    %644 = arith.maximumf %642, %643 : vector<1x1xf32>
    %645 = arith.addf %639, %644 : vector<1x1xf32>
    %cst_166 = arith.constant dense<0.000000e+00> : vector<1xf32>
    %646 = vector.multi_reduction <add>, %645, %cst_166 [0] : vector<1x1xf32> to vector<1xf32>
    %647 = vector.shape_cast %646 : vector<1xf32> to vector<1x1xf32>
    %cst_167 = arith.constant 1.000000e+00 : f32
    %648 = vector.broadcast %cst_167 : f32 to vector<1x1xf32>
    %649 = arith.divf %647, %648 : vector<1x1xf32>
    %cst_168 = arith.constant dense<0.000000e+00> : vector<1xf32>
    %650 = vector.multi_reduction <add>, %183, %cst_168 [0] : vector<1x1xf32> to vector<1xf32>
    %651 = vector.shape_cast %650 : vector<1xf32> to vector<1x1xf32>
    %cst_169 = arith.constant 1.000000e+00 : f32
    %652 = vector.broadcast %cst_169 : f32 to vector<1x1xf32>
    %653 = arith.divf %651, %652 : vector<1x1xf32>
    %654 = arith.divf %649, %653 : vector<1x1xf32>
    %cst_170 = arith.constant 2.000000e+00 : f32
    %655 = vector.broadcast %cst_170 : f32 to vector<1x1xf32>
    %656 = arith.divf %654, %655 : vector<1x1xf32>
    %657 = vector.extract_strided_slice %507 {offsets = [0, 0], sizes = [1, 1], strides = [1, 1]} : vector<1x16xf32> to vector<1x1xf32>
    %658 = vector.extract_strided_slice %507 {offsets = [0, 15], sizes = [1, 1], strides = [1, 1]} : vector<1x16xf32> to vector<1x1xf32>
    %659 = arith.subf %329, %657 : vector<1x1xf32>
    %cst_171 = arith.constant 1.000000e-03 : f32
    %660 = vector.broadcast %cst_171 : f32 to vector<1x1xf32>
    %661 = arith.subf %659, %660 : vector<1x1xf32>
    %cst_172 = arith.constant 0.000000e+00 : f32
    %662 = vector.broadcast %cst_172 : f32 to vector<1x1xf32>
    %663 = arith.maximumf %661, %662 : vector<1x1xf32>
    %cst_173 = arith.constant 1.000000e-03 : f32
    %664 = vector.broadcast %cst_173 : f32 to vector<1x1xf32>
    %665 = arith.addf %658, %664 : vector<1x1xf32>
    %666 = arith.subf %665, %329 : vector<1x1xf32>
    %cst_174 = arith.constant 0.000000e+00 : f32
    %667 = vector.broadcast %cst_174 : f32 to vector<1x1xf32>
    %668 = arith.maximumf %666, %667 : vector<1x1xf32>
    %669 = arith.addf %663, %668 : vector<1x1xf32>
    %cst_175 = arith.constant dense<0.000000e+00> : vector<1xf32>
    %670 = vector.multi_reduction <add>, %669, %cst_175 [0] : vector<1x1xf32> to vector<1xf32>
    %671 = vector.shape_cast %670 : vector<1xf32> to vector<1x1xf32>
    %cst_176 = arith.constant 1.000000e+00 : f32
    %672 = vector.broadcast %cst_176 : f32 to vector<1x1xf32>
    %673 = arith.divf %671, %672 : vector<1x1xf32>
    %cst_177 = arith.constant dense<0.000000e+00> : vector<1xf32>
    %674 = vector.multi_reduction <add>, %329, %cst_177 [0] : vector<1x1xf32> to vector<1xf32>
    %675 = vector.shape_cast %674 : vector<1xf32> to vector<1x1xf32>
    %cst_178 = arith.constant 1.000000e+00 : f32
    %676 = vector.broadcast %cst_178 : f32 to vector<1x1xf32>
    %677 = arith.divf %675, %676 : vector<1x1xf32>
    %678 = arith.divf %673, %677 : vector<1x1xf32>
    %cst_179 = arith.constant 2.000000e+00 : f32
    %679 = vector.broadcast %cst_179 : f32 to vector<1x1xf32>
    %680 = arith.divf %678, %679 : vector<1x1xf32>
    %681 = arith.addf %656, %680 : vector<1x1xf32>
    %682 = vector.extract_strided_slice %35 {offsets = [0, 0], sizes = [1, 16], strides = [1, 1]} : vector<2x16xf32> to vector<1x16xf32>
    %683 = vector.broadcast %456 : vector<1x1xf32> to vector<1x16xf32>
    %684 = arith.mulf %683, %682 : vector<1x16xf32>
    %685 = vector.extract_strided_slice %35 {offsets = [1, 0], sizes = [1, 16], strides = [1, 1]} : vector<2x16xf32> to vector<1x16xf32>
    %686 = vector.broadcast %632 : vector<1x1xf32> to vector<1x16xf32>
    %687 = arith.mulf %686, %685 : vector<1x16xf32>
    %688 = arith.addf %684, %687 : vector<1x16xf32>
    %689 = arith.addf %505, %681 : vector<1x1xf32>
    %c0_i32 = arith.constant 0 : i32
    %690 = vector.broadcast %c0_i32 : i32 to vector<1x128xi32>
    %691 = arith.cmpi eq, %4, %690 : vector<1x128xi32>
    %692 = vector.extract_strided_slice %688 {offsets = [0, 0], sizes = [1, 1], strides = [1, 1]} : vector<1x16xf32> to vector<1x1xf32>
    %cst_180 = arith.constant 0.000000e+00 : f32
    %693 = vector.shape_cast %692 : vector<1x1xf32> to vector<1x1xf32>
    %694 = vector.broadcast %693 : vector<1x1xf32> to vector<1x128xf32>
    %695 = vector.broadcast %cst_180 : f32 to vector<1x128xf32>
    %696 = arith.select %691, %694, %695 : vector<1x128xi1>, vector<1x128xf32>
    %c1_i32 = arith.constant 1 : i32
    %697 = vector.broadcast %c1_i32 : i32 to vector<1x128xi32>
    %698 = arith.cmpi eq, %4, %697 : vector<1x128xi32>
    %699 = vector.extract_strided_slice %688 {offsets = [0, 1], sizes = [1, 1], strides = [1, 1]} : vector<1x16xf32> to vector<1x1xf32>
    %cst_181 = arith.constant 0.000000e+00 : f32
    %700 = vector.shape_cast %699 : vector<1x1xf32> to vector<1x1xf32>
    %701 = vector.broadcast %700 : vector<1x1xf32> to vector<1x128xf32>
    %702 = vector.broadcast %cst_181 : f32 to vector<1x128xf32>
    %703 = arith.select %698, %701, %702 : vector<1x128xi1>, vector<1x128xf32>
    %704 = arith.addf %696, %703 : vector<1x128xf32>
    %c2_i32 = arith.constant 2 : i32
    %705 = vector.broadcast %c2_i32 : i32 to vector<1x128xi32>
    %706 = arith.cmpi eq, %4, %705 : vector<1x128xi32>
    %cst_182 = arith.constant 0.000000e+00 : f32
    %707 = vector.shape_cast %689 : vector<1x1xf32> to vector<1x1xf32>
    %708 = vector.broadcast %707 : vector<1x1xf32> to vector<1x128xf32>
    %709 = vector.broadcast %cst_182 : f32 to vector<1x128xf32>
    %710 = arith.select %706, %708, %709 : vector<1x128xi1>, vector<1x128xf32>
    %711 = arith.addf %704, %710 : vector<1x128xf32>
    %c0_183 = arith.constant 0 : index
    %c0_184 = arith.constant 0 : index
    %712 = vector.load %arg2[%c0_183, %c0_184] : memref<1x128xf32, #tpu.memory_space<vmem>>, vector<1x128xf32>
    tpu.vector_store %arg2[%c0_183, %c0_184], %711 {strides = array<i32>} : memref<1x128xf32, #tpu.memory_space<vmem>>, vector<1x128xf32>,
    return
  }
}

</mosaic_0001>

<llo_original>
// kernel: tpu_custom_call.1
$region0: #{tpu_custom_call.1}
  #allocation0 [shape = 'u32[]', space=smem, size = 0x4, offset = 0x4, fixed_abs, tag = 'smem constant byte address 0x4 - core index']
  #allocation1 [shape = 'u32[72,128]{1,0:T(1,128)}', space=vmem, size = 0x9000, scoped, tag = 'internal scratch']
  %s0 = inlined_call_operand.vmem [shape: f32[3,2], index: 0, kind: input, shape index: {}]
  %s1 = inlined_call_operand.vmem [shape: f32[84,16], index: 1, kind: input, shape index: {}]
  %s2 = inlined_call_operand.hbm [shape: f32[1,128], index: 2, kind: output, shape index: {}]
  %s3 = sld [smem:[#allocation0]]
  $region18: #{tpu_custom_call.1} parent=0
    _
  %s5 = ssub.s32 1, %s3
  %s6 = scalar_select 0, %s5, %s3
  $region1: #{tpu_custom_call.1} parent=0
    #allocation2 [shape = 'u8[512]{0}', space=vmem, size = 0x400, scoped, tag = 'output window, operand 0, single buffered']
    #allocation3 [shape = 's32[1]{0}', space=sflag, size = 0x4, scoped, tag = 'scoped memory for tpu_custom_call.1']
    %7 = vsyncpa [#allocation3], 0
    // Predicated region
    $region2: #{tpu_custom_call.1} parent=1 // pred_check
      _
    $region3: #{tpu_custom_call.1} parent=1 // pred_check_branch
      %9 = sbr.rel (0) target = $region5
    $region4: #{tpu_custom_call.1} parent=1 // pred_region
      _
    $region5: #{tpu_custom_call.1} parent=1 // pred_fallthru
      _
    // Predicated region
    $region6: #{tpu_custom_call.1} parent=1 // pred_check
      _
    $region7: #{tpu_custom_call.1} parent=1 // pred_check_branch
      %11 = sbr.rel (0) target = $region9
    $region8: #{tpu_custom_call.1} parent=1 // pred_region
      _
    $region9: #{tpu_custom_call.1} parent=1 // pred_fallthru
      _
    %v12 = vlaneseq
    %v13 = vand.u32 %v12, 127
    %v14 = vcvt.s32.f32 %v13
    %v15 = vlaneseq
    %v16 = vshrl.u32 %v15, 7
    %v17 = vadd.s32 %v16, 8
    %v18 = vcvt.s32.f32 %v16
    %v19 = vcvt.s32.f32 %v17
    %v20 = vld [vmem:[%s0] sm:$0x7]
    %vm21 = vcmp.eq.f32.partialorder %v20, 1.0
    %vm22 = vcmp.eq.f32.partialorder %v20, 2.0
    %v23 = vld [vmem:[%s1] sm:$0xff]
    %v24 = vld [vmem:[%s1 + $0x8] sm:$0xff]
    %v25 = vld [vmem:[%s1 + $0x10] sm:$0xff]
    %v26 = vld [vmem:[%s1 + $0x18] sm:$0xff]
    %v27 = vld [vmem:[%s1 + $0x20] sm:$0xff]
    %v28 = vld [vmem:[%s1 + $0x28] sm:$0xff]
    %v29 = vld [vmem:[%s1 + $0x30] sm:$0xff]
    %v30 = vld [vmem:[%s1 + $0x38] sm:$0xff]
    %v31 = vld [vmem:[%s1 + $0x40] sm:$0xff]
    %v32 = vld [vmem:[%s1 + $0x48] sm:$0xff]
    %v33 = vld [vmem:[%s1 + $0x50] sm:$0xf]
    %v34 = vxor.u32 %v32, 2147483648
    %v35 = vmul.f32 %v34, 1.442695
    %v36 = vpow.pop %v35
    %v37 = vadd.f32 %v36, 1.0
    %v38 = vrcp.pop %v37
    %v39 = vmul.f32 %v37, %v38
    %v40 = vsub.f32 1.0, %v39
    %v41 = vmul.f32 %v38, %v40
    %v42 = vadd.f32 %v38, %v41
    %vm43 = vweird.f32 %v37
    %vm44 = vweird.f32 %v38
    %vm45 = vmor %vm43, %vm44
    %v46 = vsel %vm45, %v38, %v42
    %v47 = vand.u32 2147483647, %v37
    %vm48 = vcmp.eq.f32.partialorder %v47, 8.507059e+37
    %v49 = vand.u32 %v37, 2147483648
    %v50 = vor.u32 1.1754944e-38, %v49
    %v51 = vsel %vm48, %v50, %v46
    %v52 = vmul.f32 1.0, %v51
    %v53 = vperm.slane %v31, 0
    %55 = vrot.lane.b32.xlu0 %v20, 14
    %v56 = vpop.permute.xlu0 %55
    %v58 = vmax.f32 %v53, %v56
    %60 = vrot.lane.b32.xlu0 %v58, 113
    %v61 = vpop.permute.xlu0 %60
    %v63 = vmin.f32 %v53, %v61
    %65 = vset.pattern.permute.xlu0 0
    %66 = vperm.xlu0 %65, %v63
    %v67 = vpop.permute.xlu0 %66
    %vm69 = vcmp.gt.f32.partialorder %v53, %v67
    %v70 = vsel %vm69, 1, 0
    %v71 = vcvt.s32.f32 %v70
    %vm72 = vcmask 124928
    %v73 = vsel %vm72, %v71, 0.0
    %74 = vadd.xlane.f32.xlu0 %v73
    %v75 = vpop.xlane.xlu0 %74
    %v76 = vsub.f32 %v75, 1.0
    %vm77 = vcmp.lt.f32.partialorder %v76, 0.0
    %v78 = vadd.f32 %v76, 16.0
    %v79 = vsel %vm77, %v78, %v76
    %vm80 = vcmp.eq.f32.partialorder %v14, %v75
    %v81 = vsel %vm80, 1, 0
    %v82 = vcvt.s32.f32 %v81
    %vm83 = vcmp.eq.f32.partialorder %v14, %v79
    %v84 = vsel %vm83, 1, 0
    %v85 = vcvt.s32.f32 %v84
    %v86 = vmul.f32 %v82, %v53
    %v87 = vmul.f32 %v85, %v53
    %v89 = vrot.slane %v87, 5
    %vm91 = vcmask 1042432
    %v92 = vsel %vm91, %v86, %v89
    %vm93 = vcmask 128000
    %v94 = vsel %vm93, %v92, 0.0
    %95 = vadd.xlane.f32.xlu0 %v94
    %v96 = vpop.xlane.xlu0 %95
    %v97 = vrot.slane %v63, 5
    %v99 = vsub.f32 %v96, %v97
    %v101 = vrot.slane %v96, 5
    %v103 = vsub.f32 %v96, %v101
    %v104 = vrcp.pop %v103
    %v105 = vmul.f32 %v103, %v104
    %v106 = vsub.f32 1.0, %v105
    %v107 = vmul.f32 %v104, %v106
    %v108 = vadd.f32 %v104, %v107
    %vm109 = vweird.f32 %v103
    %vm110 = vweird.f32 %v104
    %vm111 = vmor %vm109, %vm110
    %v112 = vsel %vm111, %v104, %v108
    %v113 = vand.u32 2147483647, %v103
    %vm114 = vcmp.eq.f32.partialorder %v113, 8.507059e+37
    %v115 = vand.u32 %v103, 2147483648
    %v116 = vor.u32 1.1754944e-38, %v115
    %v117 = vsel %vm114, %v116, %v112
    %v118 = vmul.f32 %v99, %v117
    %v119 = vrcp.pop 7.5
    %v120 = vmul.f32 7.5, %v119
    %v121 = vsub.f32 1.0, %v120
    %v122 = vmul.f32 %v119, %v121
    %v123 = vadd.f32 %v119, %v122
    %vm124 = vweird.f32 %v119
    %v125 = vsel %vm124, %v119, %v123
    %v126 = vmul.f32 %v118, %v125
    %v127 = vmul.f32 %v76, %v125
    %v129 = vrot.slane %v127, 5
    %v131 = vadd.f32 %v126, %v129
    %v132 = vsub.f32 %v131, 1.0
    %v133 = vadd.f32 %v132, 1.0
    %v134 = vmul.f32 %v133, 0.5
    %v135 = vmul.f32 %v134, 15.0
    %v136 = vmax.f32 %v135, 0.0
    %v137 = vmin.f32 %v136, 15.0
    %v139 = vrot.slane %v52, 7
    %140 = vrot.lane.b32.xlu0 %v139, 15
    %v141 = vpop.permute.xlu0 %140
    %v143 = vmax.f32 %v31, %v141
    %145 = vrot.lane.b32.xlu0 %v143, 113
    %v146 = vpop.permute.xlu0 %145
    %v148 = vmin.f32 %v31, %v146
    %150 = vset.pattern.permute.xlu0 0
    %151 = vperm.xlu0 %150, %v148
    %v152 = vpop.permute.xlu0 %151
    %vm154 = vcmp.gt.f32.partialorder %v31, %v152
    %v155 = vsel %vm154, 1, 0
    %v156 = vcvt.s32.f32 %v155
    %vm157 = vcmask 123905
    %v158 = vsel %vm157, %v156, 0.0
    %159 = vadd.xlane.f32.xlu0 %v158
    %v160 = vpop.xlane.xlu0 %159
    %v161 = vsub.f32 %v160, 1.0
    %vm162 = vcmp.lt.f32.partialorder %v161, 0.0
    %v163 = vadd.f32 %v161, 16.0
    %v164 = vsel %vm162, %v163, %v161
    %vm165 = vcmp.eq.f32.partialorder %v14, %v160
    %v166 = vsel %vm165, 1, 0
    %v167 = vcvt.s32.f32 %v166
    %vm168 = vcmp.eq.f32.partialorder %v14, %v164
    %v169 = vsel %vm168, 1, 0
    %v170 = vcvt.s32.f32 %v169
    %v171 = vmul.f32 %v167, %v31
    %v172 = vmul.f32 %v170, %v31
    %v174 = vrot.slane %v171, 1
    %vm176 = vcmask 1040384
    %v177 = vsel %vm176, %v174, %v172
    %vm178 = vcmask 123904
    %v179 = vsel %vm178, %v177, 0.0
    %180 = vadd.xlane.f32.xlu0 %v179
    %v181 = vpop.xlane.xlu0 %180
    %v182 = vsub.f32 %v181, %v148
    %v184 = vrot.slane %v181, 7
    %v186 = vsub.f32 %v181, %v184
    %v187 = vrcp.pop %v186
    %v188 = vmul.f32 %v186, %v187
    %v189 = vsub.f32 1.0, %v188
    %v190 = vmul.f32 %v187, %v189
    %v191 = vadd.f32 %v187, %v190
    %vm192 = vweird.f32 %v186
    %vm193 = vweird.f32 %v187
    %vm194 = vmor %vm192, %vm193
    %v195 = vsel %vm194, %v187, %v191
    %v196 = vand.u32 2147483647, %v186
    %vm197 = vcmp.eq.f32.partialorder %v196, 8.507059e+37
    %v198 = vand.u32 %v186, 2147483648
    %v199 = vor.u32 1.1754944e-38, %v198
    %v200 = vsel %vm197, %v199, %v195
    %v201 = vmul.f32 %v182, %v200
    %v202 = vmul.f32 %v201, %v125
    %v203 = vmul.f32 %v161, %v125
    %v204 = vadd.f32 %v202, %v203
    %v205 = vsub.f32 %v204, 1.0
    %v206 = vadd.f32 %v205, 1.0
    %v207 = vmul.f32 %v206, 0.5
    %v208 = vmul.f32 %v207, 15.0
    %v209 = vmax.f32 %v208, 0.0
    %v210 = vmin.f32 %v209, 15.0
    %v211 = vperm.slane %v210, 1
    %v212 = vsub.f32 %v211, %v18
    %v213 = vsub.f32 %v211, %v19
    %v214 = vand.u32 2147483647, %v212
    %v215 = vand.u32 2147483647, %v213
    %v216 = vsub.f32 1.0, %v214
    %v217 = vsub.f32 1.0, %v215
    %v218 = vmax.f32 %v216, 0.0
    %v219 = vmax.f32 %v217, 0.0
    %221 = vset.pattern.permute.xlu0 0
    %222 = vperm.xlu0 %221, %v137
    %v223 = vpop.permute.xlu0 %222
    %v225 = vsub.f32 %v223, %v14
    %v226 = vand.u32 2147483647, %v225
    %v227 = vsub.f32 1.0, %v226
    %v228 = vmax.f32 %v227, 0.0
    %230 = vset.pattern.permute.xlu0 0
    %231 = vperm.xlu0 %230, %v218
    %v232 = vpop.permute.xlu0 %231
    %235 = vset.pattern.permute.xlu0 0
    %236 = vperm.xlu0 %235, %v219
    %v237 = vpop.permute.xlu0 %236
    %v239 = vmul.f32 %v23, %v232
    %v240 = vmul.f32 %v24, %v237
    %vm241 = vcmask 130048
    %v242 = vsel %vm241, %v239, 0.0
    %v243 = vsel %vm241, %v240, 0.0
    %v244 = vadd.f32 %v242, %v243
    %v245 = vrot.slane %v244, 4
    %v246 = vadd.f32 %v244, %v245
    %v247 = vrot.slane %v246, 2
    %v248 = vadd.f32 %v246, %v247
    %v249 = vrot.slane %v248, 1
    %v250 = vadd.f32 %v248, %v249
    %v251 = vmul.f32 %v228, %v250
    %vm252 = vcmask 128003
    %v253 = vsel %vm252, %v251, 0.0
    %254 = vadd.xlane.f32.xlu0 %v253
    %v255 = vpop.xlane.xlu0 %254
    %v257 = vrot.slane %v255, 3
    %v259 = vsel %vm21, %v257, 0.0
    %vm262 = vcmask 1041408
    %v263 = vrot.slane %v32, 6
    %v264 = vrot.slane %v33, 6
    %v265 = vsel %vm262, %v263, %v264
    %v267 = vmul.f32 %v259, %v265
    %269 = vset.pattern.permute.xlu0 0
    %270 = vperm.xlu0 %269, %v267
    %v271 = vpop.permute.xlu0 %270
    %v273 = vrot.slane %v52, 1
    %v275 = vmul.f32 %v271, %v273
    %v276 = vsel %vm72, %v275, 0.0
    %v277 = vrot.slane %v276, 4
    %v278 = vadd.f32 %v276, %v277
    %v279 = vrot.slane %v278, 2
    %v280 = vadd.f32 %v278, %v279
    %v281 = vrot.slane %v280, 1
    %v282 = vadd.f32 %v280, %v281
    %v283 = vperm.slane %v31, 2
    %v284 = vmax.f32 %v283, %v56
    %286 = vrot.lane.b32.xlu0 %v284, 113
    %v287 = vpop.permute.xlu0 %286
    %v289 = vmin.f32 %v283, %v287
    %291 = vset.pattern.permute.xlu0 0
    %292 = vperm.xlu0 %291, %v289
    %v293 = vpop.permute.xlu0 %292
    %vm295 = vcmp.gt.f32.partialorder %v283, %v293
    %v296 = vsel %vm295, 1, 0
    %v297 = vcvt.s32.f32 %v296
    %v298 = vsel %vm72, %v297, 0.0
    %299 = vadd.xlane.f32.xlu0 %v298
    %v300 = vpop.xlane.xlu0 %299
    %v301 = vsub.f32 %v300, 1.0
    %vm302 = vcmp.lt.f32.partialorder %v301, 0.0
    %v303 = vadd.f32 %v301, 16.0
    %v304 = vsel %vm302, %v303, %v301
    %vm305 = vcmp.eq.f32.partialorder %v14, %v300
    %v306 = vsel %vm305, 1, 0
    %v307 = vcvt.s32.f32 %v306
    %vm308 = vcmp.eq.f32.partialorder %v14, %v304
    %v309 = vsel %vm308, 1, 0
    %v310 = vcvt.s32.f32 %v309
    %v311 = vmul.f32 %v307, %v283
    %v312 = vmul.f32 %v310, %v283
    %v314 = vrot.slane %v312, 5
    %v316 = vsel %vm91, %v311, %v314
    %v317 = vsel %vm93, %v316, 0.0
    %318 = vadd.xlane.f32.xlu0 %v317
    %v319 = vpop.xlane.xlu0 %318
    %v320 = vrot.slane %v289, 5
    %v322 = vsub.f32 %v319, %v320
    %v324 = vrot.slane %v319, 5
    %v326 = vsub.f32 %v319, %v324
    %v327 = vrcp.pop %v326
    %v328 = vmul.f32 %v326, %v327
    %v329 = vsub.f32 1.0, %v328
    %v330 = vmul.f32 %v327, %v329
    %v331 = vadd.f32 %v327, %v330
    %vm332 = vweird.f32 %v326
    %vm333 = vweird.f32 %v327
    %vm334 = vmor %vm332, %vm333
    %v335 = vsel %vm334, %v327, %v331
    %v336 = vand.u32 2147483647, %v326
    %vm337 = vcmp.eq.f32.partialorder %v336, 8.507059e+37
    %v338 = vand.u32 %v326, 2147483648
    %v339 = vor.u32 1.1754944e-38, %v338
    %v340 = vsel %vm337, %v339, %v335
    %v341 = vmul.f32 %v322, %v340
    %v342 = vmul.f32 %v341, %v125
    %v343 = vmul.f32 %v301, %v125
    %v345 = vrot.slane %v343, 5
    %v347 = vadd.f32 %v342, %v345
    %v348 = vsub.f32 %v347, 1.0
    %v349 = vadd.f32 %v348, 1.0
    %v350 = vmul.f32 %v349, 0.5
    %v351 = vmul.f32 %v350, 15.0
    %v352 = vmax.f32 %v351, 0.0
    %v353 = vmin.f32 %v352, 15.0
    %v354 = vrot.slane %v52, 5
    %355 = vrot.lane.b32.xlu0 %v354, 14
    %v356 = vpop.permute.xlu0 %355
    %v358 = vmax.f32 %v31, %v356
    %360 = vrot.lane.b32.xlu0 %v358, 113
    %v361 = vpop.permute.xlu0 %360
    %v363 = vmin.f32 %v31, %v361
    %365 = vset.pattern.permute.xlu0 0
    %366 = vperm.xlu0 %365, %v363
    %v367 = vpop.permute.xlu0 %366
    %vm369 = vcmp.gt.f32.partialorder %v31, %v367
    %v370 = vsel %vm369, 1, 0
    %v371 = vcvt.s32.f32 %v370
    %vm372 = vcmask 125955
    %v373 = vsel %vm372, %v371, 0.0
    %374 = vadd.xlane.f32.xlu0 %v373
    %v375 = vpop.xlane.xlu0 %374
    %v376 = vsub.f32 %v375, 1.0
    %vm377 = vcmp.lt.f32.partialorder %v376, 0.0
    %v378 = vadd.f32 %v376, 16.0
    %v379 = vsel %vm377, %v378, %v376
    %vm380 = vcmp.eq.f32.partialorder %v14, %v375
    %v381 = vsel %vm380, 1, 0
    %v382 = vcvt.s32.f32 %v381
    %vm383 = vcmp.eq.f32.partialorder %v14, %v379
    %v384 = vsel %vm383, 1, 0
    %v385 = vcvt.s32.f32 %v384
    %v386 = vmul.f32 %v382, %v31
    %v387 = vmul.f32 %v385, %v31
    %v389 = vrot.slane %v386, 3
    %v392 = vrot.slane %v387, 2
    %v394 = vsel %vm176, %v389, %v392
    %v395 = vsel %vm178, %v394, 0.0
    %396 = vadd.xlane.f32.xlu0 %v395
    %v397 = vpop.xlane.xlu0 %396
    %v398 = vrot.slane %v363, 2
    %v400 = vsub.f32 %v397, %v398
    %v402 = vrot.slane %v397, 7
    %v404 = vsub.f32 %v397, %v402
    %v405 = vrcp.pop %v404
    %v406 = vmul.f32 %v404, %v405
    %v407 = vsub.f32 1.0, %v406
    %v408 = vmul.f32 %v405, %v407
    %v409 = vadd.f32 %v405, %v408
    %vm410 = vweird.f32 %v404
    %vm411 = vweird.f32 %v405
    %vm412 = vmor %vm410, %vm411
    %v413 = vsel %vm412, %v405, %v409
    %v414 = vand.u32 2147483647, %v404
    %vm415 = vcmp.eq.f32.partialorder %v414, 8.507059e+37
    %v416 = vand.u32 %v404, 2147483648
    %v417 = vor.u32 1.1754944e-38, %v416
    %v418 = vsel %vm415, %v417, %v413
    %v419 = vmul.f32 %v400, %v418
    %v420 = vmul.f32 %v419, %v125
    %v421 = vmul.f32 %v376, %v125
    %v423 = vrot.slane %v421, 2
    %v425 = vadd.f32 %v420, %v423
    %v426 = vsub.f32 %v425, 1.0
    %v427 = vadd.f32 %v426, 1.0
    %v428 = vmul.f32 %v427, 0.5
    %v429 = vmul.f32 %v428, 15.0
    %v430 = vmax.f32 %v429, 0.0
    %v431 = vmin.f32 %v430, 15.0
    %v432 = vperm.slane %v431, 1
    %v433 = vsub.f32 %v432, %v18
    %v434 = vsub.f32 %v432, %v19
    %v435 = vand.u32 2147483647, %v433
    %v436 = vand.u32 2147483647, %v434
    %v437 = vsub.f32 1.0, %v435
    %v438 = vsub.f32 1.0, %v436
    %v439 = vmax.f32 %v437, 0.0
    %v440 = vmax.f32 %v438, 0.0
    %442 = vset.pattern.permute.xlu0 0
    %443 = vperm.xlu0 %442, %v353
    %v444 = vpop.permute.xlu0 %443
    %v446 = vsub.f32 %v444, %v14
    %v447 = vand.u32 2147483647, %v446
    %v448 = vsub.f32 1.0, %v447
    %v449 = vmax.f32 %v448, 0.0
    %451 = vset.pattern.permute.xlu0 0
    %452 = vperm.xlu0 %451, %v439
    %v453 = vpop.permute.xlu0 %452
    %456 = vset.pattern.permute.xlu0 0
    %457 = vperm.xlu0 %456, %v440
    %v458 = vpop.permute.xlu0 %457
    %v460 = vmul.f32 %v25, %v453
    %v461 = vmul.f32 %v26, %v458
    %v462 = vsel %vm241, %v460, 0.0
    %v463 = vsel %vm241, %v461, 0.0
    %v464 = vadd.f32 %v462, %v463
    %v465 = vrot.slane %v464, 4
    %v466 = vadd.f32 %v464, %v465
    %v467 = vrot.slane %v466, 2
    %v468 = vadd.f32 %v466, %v467
    %v469 = vrot.slane %v468, 1
    %v470 = vadd.f32 %v468, %v469
    %v471 = vmul.f32 %v449, %v470
    %v472 = vsel %vm252, %v471, 0.0
    %473 = vadd.xlane.f32.xlu0 %v472
    %v474 = vpop.xlane.xlu0 %473
    %v476 = vrot.slane %v474, 3
    %v478 = vsel %vm22, %v476, 0.0
    %v479 = vrot.slane %v33, 1
    %v481 = vmul.f32 %v478, %v479
    %483 = vset.pattern.permute.xlu0 0
    %484 = vperm.xlu0 %483, %v481
    %v485 = vpop.permute.xlu0 %484
    %v487 = vmul.f32 %v485, %v273
    %v488 = vsel %vm72, %v487, 0.0
    %v489 = vrot.slane %v488, 4
    %v490 = vadd.f32 %v488, %v489
    %v491 = vrot.slane %v490, 2
    %v492 = vadd.f32 %v490, %v491
    %v493 = vrot.slane %v492, 1
    %v494 = vadd.f32 %v492, %v493
    %496 = vrot.lane.b32.xlu0 %v282, 15
    %v497 = vpop.permute.xlu0 %496
    %v499 = vmax.f32 %v31, %v497
    %501 = vrot.lane.b32.xlu0 %v499, 113
    %v502 = vpop.permute.xlu0 %501
    %v504 = vmin.f32 %v31, %v502
    %506 = vset.pattern.permute.xlu0 0
    %507 = vperm.xlu0 %506, %v504
    %v508 = vpop.permute.xlu0 %507
    %vm510 = vcmp.gt.f32.partialorder %v31, %v508
    %v511 = vsel %vm510, 1, 0
    %v512 = vcvt.s32.f32 %v511
    %vm513 = vcmask 126980
    %v514 = vsel %vm513, %v512, 0.0
    %515 = vadd.xlane.f32.xlu0 %v514
    %v516 = vpop.xlane.xlu0 %515
    %v517 = vsub.f32 %v516, 1.0
    %vm518 = vcmp.lt.f32.partialorder %v517, 0.0
    %v519 = vadd.f32 %v517, 16.0
    %v520 = vsel %vm518, %v519, %v517
    %vm521 = vcmp.eq.f32.partialorder %v14, %v516
    %v522 = vsel %vm521, 1, 0
    %v523 = vcvt.s32.f32 %v522
    %vm524 = vcmp.eq.f32.partialorder %v14, %v520
    %v525 = vsel %vm524, 1, 0
    %v526 = vcvt.s32.f32 %v525
    %v527 = vmul.f32 %v523, %v31
    %v528 = vmul.f32 %v526, %v31
    %v530 = vrot.slane %v527, 4
    %v533 = vrot.slane %v528, 3
    %v535 = vsel %vm176, %v530, %v533
    %v536 = vsel %vm178, %v535, 0.0
    %537 = vadd.xlane.f32.xlu0 %v536
    %v538 = vpop.xlane.xlu0 %537
    %v539 = vrot.slane %v504, 3
    %v541 = vsub.f32 %v538, %v539
    %v543 = vrot.slane %v538, 7
    %v545 = vsub.f32 %v538, %v543
    %v546 = vrcp.pop %v545
    %v547 = vmul.f32 %v545, %v546
    %v548 = vsub.f32 1.0, %v547
    %v549 = vmul.f32 %v546, %v548
    %v550 = vadd.f32 %v546, %v549
    %vm551 = vweird.f32 %v545
    %vm552 = vweird.f32 %v546
    %vm553 = vmor %vm551, %vm552
    %v554 = vsel %vm553, %v546, %v550
    %v555 = vand.u32 2147483647, %v545
    %vm556 = vcmp.eq.f32.partialorder %v555, 8.507059e+37
    %v557 = vand.u32 %v545, 2147483648
    %v558 = vor.u32 1.1754944e-38, %v557
    %v559 = vsel %vm556, %v558, %v554
    %v560 = vmul.f32 %v541, %v559
    %v561 = vmul.f32 %v560, %v125
    %v562 = vmul.f32 %v517, %v125
    %v564 = vrot.slane %v562, 3
    %v566 = vadd.f32 %v561, %v564
    %v567 = vsub.f32 %v566, 1.0
    %v568 = vadd.f32 %v567, 1.0
    %v569 = vmul.f32 %v568, 0.5
    %v570 = vmul.f32 %v569, 15.0
    %v571 = vmax.f32 %v570, 0.0
    %v572 = vmin.f32 %v571, 15.0
    %574 = vrot.lane.b32.xlu0 %v494, 15
    %v575 = vpop.permute.xlu0 %574
    %v577 = vmax.f32 %v31, %v575
    %579 = vrot.lane.b32.xlu0 %v577, 113
    %v580 = vpop.permute.xlu0 %579
    %v582 = vmin.f32 %v31, %v580
    %584 = vset.pattern.permute.xlu0 0
    %585 = vperm.xlu0 %584, %v582
    %v586 = vpop.permute.xlu0 %585
    %vm588 = vcmp.gt.f32.partialorder %v31, %v586
    %v589 = vsel %vm588, 1, 0
    %v590 = vcvt.s32.f32 %v589
    %vm591 = vcmask 128005
    %v592 = vsel %vm591, %v590, 0.0
    %593 = vadd.xlane.f32.xlu0 %v592
    %v594 = vpop.xlane.xlu0 %593
    %v595 = vsub.f32 %v594, 1.0
    %vm596 = vcmp.lt.f32.partialorder %v595, 0.0
    %v597 = vadd.f32 %v595, 16.0
    %v598 = vsel %vm596, %v597, %v595
    %vm599 = vcmp.eq.f32.partialorder %v14, %v594
    %v600 = vsel %vm599, 1, 0
    %v601 = vcvt.s32.f32 %v600
    %vm602 = vcmp.eq.f32.partialorder %v14, %v598
    %v603 = vsel %vm602, 1, 0
    %v604 = vcvt.s32.f32 %v603
    %v605 = vmul.f32 %v601, %v31
    %v606 = vmul.f32 %v604, %v31
    %v608 = vrot.slane %v605, 5
    %v611 = vrot.slane %v606, 4
    %v613 = vsel %vm176, %v608, %v611
    %v614 = vsel %vm178, %v613, 0.0
    %615 = vadd.xlane.f32.xlu0 %v614
    %v616 = vpop.xlane.xlu0 %615
    %v617 = vrot.slane %v582, 4
    %v619 = vsub.f32 %v616, %v617
    %v621 = vrot.slane %v616, 7
    %v623 = vsub.f32 %v616, %v621
    %v624 = vrcp.pop %v623
    %v625 = vmul.f32 %v623, %v624
    %v626 = vsub.f32 1.0, %v625
    %v627 = vmul.f32 %v624, %v626
    %v628 = vadd.f32 %v624, %v627
    %vm629 = vweird.f32 %v623
    %vm630 = vweird.f32 %v624
    %vm631 = vmor %vm629, %vm630
    %v632 = vsel %vm631, %v624, %v628
    %v633 = vand.u32 2147483647, %v623
    %vm634 = vcmp.eq.f32.partialorder %v633, 8.507059e+37
    %v635 = vand.u32 %v623, 2147483648
    %v636 = vor.u32 1.1754944e-38, %v635
    %v637 = vsel %vm634, %v636, %v632
    %v638 = vmul.f32 %v619, %v637
    %v639 = vmul.f32 %v638, %v125
    %v640 = vmul.f32 %v595, %v125
    %v642 = vrot.slane %v640, 4
    %v644 = vadd.f32 %v639, %v642
    %v645 = vsub.f32 %v644, 1.0
    %v646 = vadd.f32 %v645, 1.0
    %v647 = vmul.f32 %v646, 0.5
    %v648 = vmul.f32 %v647, 15.0
    %v649 = vmax.f32 %v648, 0.0
    %v650 = vmin.f32 %v649, 15.0
    %v651 = vperm.slane %v650, 1
    %v652 = vsub.f32 %v651, %v18
    %v653 = vsub.f32 %v651, %v19
    %v654 = vand.u32 2147483647, %v652
    %v655 = vand.u32 2147483647, %v653
    %v656 = vsub.f32 1.0, %v654
    %v657 = vsub.f32 1.0, %v655
    %v658 = vmax.f32 %v656, 0.0
    %v659 = vmax.f32 %v657, 0.0
    %661 = vset.pattern.permute.xlu0 0
    %662 = vperm.xlu0 %661, %v572
    %v663 = vpop.permute.xlu0 %662
    %v665 = vsub.f32 %v663, %v14
    %v666 = vand.u32 2147483647, %v665
    %v667 = vsub.f32 1.0, %v666
    %v668 = vmax.f32 %v667, 0.0
    %670 = vset.pattern.permute.xlu0 0
    %671 = vperm.xlu0 %670, %v658
    %v672 = vpop.permute.xlu0 %671
    %675 = vset.pattern.permute.xlu0 0
    %676 = vperm.xlu0 %675, %v659
    %v677 = vpop.permute.xlu0 %676
    %v679 = vmul.f32 %v27, %v672
    %v680 = vmul.f32 %v28, %v677
    %v681 = vsel %vm241, %v679, 0.0
    %v682 = vsel %vm241, %v680, 0.0
    %v683 = vadd.f32 %v681, %v682
    %v684 = vrot.slane %v683, 4
    %v685 = vadd.f32 %v683, %v684
    %v686 = vrot.slane %v685, 2
    %v687 = vadd.f32 %v685, %v686
    %v688 = vrot.slane %v687, 1
    %v689 = vadd.f32 %v687, %v688
    %v690 = vmul.f32 %v668, %v689
    %v691 = vsel %vm157, %v690, 0.0
    %692 = vadd.xlane.f32.xlu0 %v691
    %v693 = vpop.xlane.xlu0 %692
    %v694 = vsub.f32 %v282, %v31
    %v695 = vsub.f32 %v694, 0.001
    %v696 = vmax.f32 %v695, 0.0
    %v697 = vadd.f32 %v31, 0.001
    %v698 = vsub.f32 %v697, %v497
    %v699 = vmax.f32 %v698, 0.0
    %701 = vrot.lane.b32.xlu0 %v699, 113
    %v702 = vpop.permute.xlu0 %701
    %v704 = vadd.f32 %v696, %v702
    %v705 = vadd.f32 %v704, 0.0
    %v706 = vadd.f32 %v282, 0.0
    %v707 = vrcp.pop %v706
    %v708 = vmul.f32 %v706, %v707
    %v709 = vsub.f32 1.0, %v708
    %v710 = vmul.f32 %v707, %v709
    %v711 = vadd.f32 %v707, %v710
    %vm712 = vweird.f32 %v706
    %vm713 = vweird.f32 %v707
    %vm714 = vmor %vm712, %vm713
    %v715 = vsel %vm714, %v707, %v711
    %v716 = vand.u32 2147483647, %v706
    %vm717 = vcmp.eq.f32.partialorder %v716, 8.507059e+37
    %v718 = vand.u32 %v706, 2147483648
    %v719 = vor.u32 1.1754944e-38, %v718
    %v720 = vsel %vm717, %v719, %v715
    %v721 = vmul.f32 %v705, %v720
    %v722 = vrcp.pop 2.0
    %v723 = vmul.f32 2.0, %v722
    %v724 = vsub.f32 1.0, %v723
    %v725 = vmul.f32 %v722, %v724
    %v726 = vadd.f32 %v722, %v725
    %vm727 = vweird.f32 %v722
    %v728 = vsel %vm727, %v722, %v726
    %v729 = vmul.f32 %v721, %v728
    %v730 = vsub.f32 %v494, %v31
    %v731 = vsub.f32 %v730, 0.001
    %v732 = vmax.f32 %v731, 0.0
    %v733 = vsub.f32 %v697, %v575
    %v734 = vmax.f32 %v733, 0.0
    %736 = vrot.lane.b32.xlu0 %v734, 113
    %v737 = vpop.permute.xlu0 %736
    %v739 = vadd.f32 %v732, %v737
    %v740 = vadd.f32 %v739, 0.0
    %v741 = vadd.f32 %v494, 0.0
    %v742 = vrcp.pop %v741
    %v743 = vmul.f32 %v741, %v742
    %v744 = vsub.f32 1.0, %v743
    %v745 = vmul.f32 %v742, %v744
    %v746 = vadd.f32 %v742, %v745
    %vm747 = vweird.f32 %v741
    %vm748 = vweird.f32 %v742
    %vm749 = vmor %vm747, %vm748
    %v750 = vsel %vm749, %v742, %v746
    %v751 = vand.u32 2147483647, %v741
    %vm752 = vcmp.eq.f32.partialorder %v751, 8.507059e+37
    %v753 = vand.u32 %v741, 2147483648
    %v754 = vor.u32 1.1754944e-38, %v753
    %v755 = vsel %vm752, %v754, %v750
    %v756 = vmul.f32 %v740, %v755
    %v757 = vmul.f32 %v756, %v728
    %v759 = vrot.slane %v757, 1
    %v761 = vadd.f32 %v729, %v759
    %762 = vrot.lane.b32.xlu0 %v282, 14
    %v763 = vpop.permute.xlu0 %762
    %v765 = vmax.f32 %v31, %v763
    %767 = vrot.lane.b32.xlu0 %v765, 113
    %v768 = vpop.permute.xlu0 %767
    %v770 = vmin.f32 %v31, %v768
    %772 = vset.pattern.permute.xlu0 0
    %773 = vperm.xlu0 %772, %v770
    %v774 = vpop.permute.xlu0 %773
    %vm776 = vcmp.gt.f32.partialorder %v31, %v774
    %v777 = vsel %vm776, 1, 0
    %v778 = vcvt.s32.f32 %v777
    %vm779 = vcmask 129030
    %v780 = vsel %vm779, %v778, 0.0
    %781 = vadd.xlane.f32.xlu0 %v780
    %v782 = vpop.xlane.xlu0 %781
    %v783 = vsub.f32 %v782, 1.0
    %vm784 = vcmp.lt.f32.partialorder %v783, 0.0
    %v785 = vadd.f32 %v783, 16.0
    %v786 = vsel %vm784, %v785, %v783
    %vm787 = vcmp.eq.f32.partialorder %v14, %v782
    %v788 = vsel %vm787, 1, 0
    %v789 = vcvt.s32.f32 %v788
    %vm790 = vcmp.eq.f32.partialorder %v14, %v786
    %v791 = vsel %vm790, 1, 0
    %v792 = vcvt.s32.f32 %v791
    %v793 = vmul.f32 %v789, %v31
    %v794 = vmul.f32 %v792, %v31
    %v796 = vrot.slane %v793, 6
    %v799 = vrot.slane %v794, 5
    %v801 = vsel %vm176, %v796, %v799
    %v802 = vsel %vm178, %v801, 0.0
    %803 = vadd.xlane.f32.xlu0 %v802
    %v804 = vpop.xlane.xlu0 %803
    %v805 = vrot.slane %v770, 5
    %v807 = vsub.f32 %v804, %v805
    %v809 = vrot.slane %v804, 7
    %v811 = vsub.f32 %v804, %v809
    %v812 = vrcp.pop %v811
    %v813 = vmul.f32 %v811, %v812
    %v814 = vsub.f32 1.0, %v813
    %v815 = vmul.f32 %v812, %v814
    %v816 = vadd.f32 %v812, %v815
    %vm817 = vweird.f32 %v811
    %vm818 = vweird.f32 %v812
    %vm819 = vmor %vm817, %vm818
    %v820 = vsel %vm819, %v812, %v816
    %v821 = vand.u32 2147483647, %v811
    %vm822 = vcmp.eq.f32.partialorder %v821, 8.507059e+37
    %v823 = vand.u32 %v811, 2147483648
    %v824 = vor.u32 1.1754944e-38, %v823
    %v825 = vsel %vm822, %v824, %v820
    %v826 = vmul.f32 %v807, %v825
    %v827 = vmul.f32 %v826, %v125
    %v828 = vmul.f32 %v783, %v125
    %v830 = vrot.slane %v828, 5
    %v832 = vadd.f32 %v827, %v830
    %v833 = vsub.f32 %v832, 1.0
    %v834 = vadd.f32 %v833, 1.0
    %v835 = vmul.f32 %v834, 0.5
    %v836 = vmul.f32 %v835, 15.0
    %v837 = vmax.f32 %v836, 0.0
    %v838 = vmin.f32 %v837, 15.0
    %839 = vrot.lane.b32.xlu0 %v494, 14
    %v840 = vpop.permute.xlu0 %839
    %v842 = vmax.f32 %v31, %v840
    %844 = vrot.lane.b32.xlu0 %v842, 113
    %v845 = vpop.permute.xlu0 %844
    %v847 = vmin.f32 %v31, %v845
    %849 = vset.pattern.permute.xlu0 0
    %850 = vperm.xlu0 %849, %v847
    %v851 = vpop.permute.xlu0 %850
    %vm853 = vcmp.gt.f32.partialorder %v31, %v851
    %v854 = vsel %vm853, 1, 0
    %v855 = vcvt.s32.f32 %v854
    %vm856 = vcmask 130055
    %v857 = vsel %vm856, %v855, 0.0
    %858 = vadd.xlane.f32.xlu0 %v857
    %v859 = vpop.xlane.xlu0 %858
    %v860 = vsub.f32 %v859, 1.0
    %vm861 = vcmp.lt.f32.partialorder %v860, 0.0
    %v862 = vadd.f32 %v860, 16.0
    %v863 = vsel %vm861, %v862, %v860
    %vm864 = vcmp.eq.f32.partialorder %v14, %v859
    %v865 = vsel %vm864, 1, 0
    %v866 = vcvt.s32.f32 %v865
    %vm867 = vcmp.eq.f32.partialorder %v14, %v863
    %v868 = vsel %vm867, 1, 0
    %v869 = vcvt.s32.f32 %v868
    %v870 = vmul.f32 %v866, %v31
    %v871 = vmul.f32 %v869, %v31
    %v873 = vrot.slane %v870, 7
    %v876 = vrot.slane %v871, 6
    %v878 = vsel %vm176, %v873, %v876
    %v879 = vsel %vm178, %v878, 0.0
    %880 = vadd.xlane.f32.xlu0 %v879
    %v881 = vpop.xlane.xlu0 %880
    %v882 = vrot.slane %v847, 6
    %v884 = vsub.f32 %v881, %v882
    %v886 = vrot.slane %v881, 7
    %v888 = vsub.f32 %v881, %v886
    %v889 = vrcp.pop %v888
    %v890 = vmul.f32 %v888, %v889
    %v891 = vsub.f32 1.0, %v890
    %v892 = vmul.f32 %v889, %v891
    %v893 = vadd.f32 %v889, %v892
    %vm894 = vweird.f32 %v888
    %vm895 = vweird.f32 %v889
    %vm896 = vmor %vm894, %vm895
    %v897 = vsel %vm896, %v889, %v893
    %v898 = vand.u32 2147483647, %v888
    %vm899 = vcmp.eq.f32.partialorder %v898, 8.507059e+37
    %v900 = vand.u32 %v888, 2147483648
    %v901 = vor.u32 1.1754944e-38, %v900
    %v902 = vsel %vm899, %v901, %v897
    %v903 = vmul.f32 %v884, %v902
    %v904 = vmul.f32 %v903, %v125
    %v905 = vmul.f32 %v860, %v125
    %v907 = vrot.slane %v905, 6
    %v909 = vadd.f32 %v904, %v907
    %v910 = vsub.f32 %v909, 1.0
    %v911 = vadd.f32 %v910, 1.0
    %v912 = vmul.f32 %v911, 0.5
    %v913 = vmul.f32 %v912, 15.0
    %v914 = vmax.f32 %v913, 0.0
    %v915 = vmin.f32 %v914, 15.0
    %v916 = vperm.slane %v915, 1
    %v917 = vsub.f32 %v916, %v18
    %v918 = vsub.f32 %v916, %v19
    %v919 = vand.u32 2147483647, %v917
    %v920 = vand.u32 2147483647, %v918
    %v921 = vsub.f32 1.0, %v919
    %v922 = vsub.f32 1.0, %v920
    %v923 = vmax.f32 %v921, 0.0
    %v924 = vmax.f32 %v922, 0.0
    %926 = vset.pattern.permute.xlu0 0
    %927 = vperm.xlu0 %926, %v838
    %v928 = vpop.permute.xlu0 %927
    %v930 = vsub.f32 %v928, %v14
    %v931 = vand.u32 2147483647, %v930
    %v932 = vsub.f32 1.0, %v931
    %v933 = vmax.f32 %v932, 0.0
    %935 = vset.pattern.permute.xlu0 0
    %936 = vperm.xlu0 %935, %v923
    %v937 = vpop.permute.xlu0 %936
    %940 = vset.pattern.permute.xlu0 0
    %941 = vperm.xlu0 %940, %v924
    %v942 = vpop.permute.xlu0 %941
    %v944 = vmul.f32 %v29, %v937
    %v945 = vmul.f32 %v30, %v942
    %v946 = vsel %vm241, %v944, 0.0
    %v947 = vsel %vm241, %v945, 0.0
    %v948 = vadd.f32 %v946, %v947
    %v949 = vrot.slane %v948, 4
    %v950 = vadd.f32 %v948, %v949
    %v951 = vrot.slane %v950, 2
    %v952 = vadd.f32 %v950, %v951
    %v953 = vrot.slane %v952, 1
    %v954 = vadd.f32 %v952, %v953
    %v955 = vmul.f32 %v933, %v954
    %v956 = vsel %vm157, %v955, 0.0
    %957 = vadd.xlane.f32.xlu0 %v956
    %v958 = vpop.xlane.xlu0 %957
    %v960 = vrot.slane %v31, 6
    %961 = vrot.lane.b32.xlu0 %v960, 1
    %v962 = vpop.permute.xlu0 %961
    %v964 = vsub.f32 %v282, %v962
    %v965 = vsub.f32 %v964, 0.001
    %v966 = vmax.f32 %v965, 0.0
    %v967 = vsub.f32 %v697, %v763
    %v968 = vmax.f32 %v967, 0.0
    %v970 = vrot.slane %v968, 6
    %971 = vrot.lane.b32.xlu0 %v970, 114
    %v972 = vpop.permute.xlu0 %971
    %v974 = vadd.f32 %v966, %v972
    %v975 = vadd.f32 %v974, 0.0
    %v976 = vmul.f32 %v975, %v720
    %v977 = vmul.f32 %v976, %v728
    %v978 = vrot.slane %v31, 7
    %979 = vrot.lane.b32.xlu0 %v978, 1
    %v980 = vpop.permute.xlu0 %979
    %v982 = vsub.f32 %v494, %v980
    %v983 = vsub.f32 %v982, 0.001
    %v984 = vmax.f32 %v983, 0.0
    %v985 = vsub.f32 %v697, %v840
    %v986 = vmax.f32 %v985, 0.0
    %v988 = vrot.slane %v986, 7
    %989 = vrot.lane.b32.xlu0 %v988, 114
    %v990 = vpop.permute.xlu0 %989
    %v992 = vadd.f32 %v984, %v990
    %v993 = vadd.f32 %v992, 0.0
    %v994 = vmul.f32 %v993, %v755
    %v995 = vmul.f32 %v994, %v728
    %v996 = vadd.f32 %v977, %v995
    %v997 = vrot.slane %v52, 3
    %v999 = vmul.f32 %v693, %v997
    %v1000 = vrot.slane %v52, 4
    %v1002 = vmul.f32 %v958, %v1000
    %v1003 = vadd.f32 %v999, %v1002
    %v1005 = vrot.slane %v996, 4
    %1006 = vrot.lane.b32.xlu0 %v1005, 127
    %v1007 = vpop.permute.xlu0 %1006
    %v1009 = vadd.f32 %v761, %v1007
    %vm1010 = vcmp.eq.s32.totalorder %v13, 0
    %1012 = vset.pattern.permute.xlu0 0
    %1013 = vperm.xlu0 %1012, %v1003
    %v1014 = vpop.permute.xlu0 %1013
    %v1016 = vsel %vm1010, %v1014, 0.0
    %vm1017 = vcmp.eq.s32.totalorder %v13, 1
    %1018 = vset.pattern.permute.xlu0 1
    %1019 = vperm.xlu0 %1018, %v1003
    %v1020 = vpop.permute.xlu0 %1019
    %v1022 = vsel %vm1017, %v1020, 0.0
    %v1023 = vadd.f32 %v1016, %v1022
    %vm1024 = vcmp.eq.s32.totalorder %v13, 2
    %1026 = vset.pattern.permute.xlu0 0
    %1027 = vperm.xlu0 %1026, %v1009
    %v1028 = vpop.permute.xlu0 %1027
    %v1030 = vsel %vm1024, %v1028, 0.0
    %v1032 = vrot.slane %v1030, 3
    %v1034 = vadd.f32 %v1023, %v1032
    %1035 = vst [vmem:[#allocation2 - $0x1] sm:$0x2] %v1034
    // Predicated region
    $region10: #{tpu_custom_call.1} parent=1 // pred_check
      _
    $region11: #{tpu_custom_call.1} parent=1 // pred_check_branch
      %1037 = sbr.rel (0) target = $region13
    $region12: #{tpu_custom_call.1} parent=1 // pred_region
      %1039 = vsyncadd [#allocation3], 0
      %s1041 = sshll.u32 [#allocation2], 4
      %s1042 = int_to_ptr.vmem [resolvable:$true] %s1041
      %s1043 = sshll.u32 %s2, 4
      %s1044 = int_to_ptr.hbm [resolvable:$true] %s1043
      %1046 = dma.vmem_to_hbm [thread:$0]  %s1042, 16, %s1044, [#allocation3]
    $region13: #{tpu_custom_call.1} parent=1 // pred_fallthru
      _
    // Predicated region
    $region14: #{tpu_custom_call.1} parent=1 // pred_check
      _
    $region15: #{tpu_custom_call.1} parent=1 // pred_check_branch
      %1048 = sbr.rel (0) target = $region17
    $region16: #{tpu_custom_call.1} parent=1 // pred_region
      %1050 = dma.done [#allocation3], 16
    $region17: #{tpu_custom_call.1} parent=1 // pred_fallthru
      _
    %1051 = vsyncpa [#allocation3], 1

</llo_original>
